<compile_context>
chip_gen: v5e
topology: v5e:2x2
jax: 0.10.0
libtpu: 0.0.40
codegen_flags: <defaults>
</compile_context>

<pallas_src>
import jax
import jax.numpy as jnp
from jax.experimental import pallas as pl
from jax.experimental.pallas import tpu as pltpu


IN_FEATURES = 32 * 32 * 3   # 3072
HIDDEN = 100
HIDDEN_PAD = 128            # pad hidden to full 128-lane vregs
OUT_FEATURES = 10
OUT_PAD = 128               # lane-dense output slab, sliced to 10 in wrapper


def mlp_kernel(x_ref, w1_ref, b1_ref, w2_ref, b2_ref, o_ref):
    # Cast the f32 x tile to bf16 on the VPU (pure slack in a mem-bound kernel);
    # this fuses the cast with the tile DMA instead of a separate XLA pass.
    x_bf16 = x_ref[...].astype(jnp.bfloat16)

    # fc1: (TB, 3072)bf16 @ (3072, 128)bf16 -> f32 accumulate on the MXU.
    h = jnp.dot(x_bf16, w1_ref[...], preferred_element_type=jnp.float32)
    # bias add + sigmoid in f32 (VPU/EUP); padded hidden lanes get sigmoid(0)=0.5
    # but the corresponding w2 rows are zero, so they contribute nothing.
    h = jax.nn.sigmoid(h + b1_ref[...])

    # TODO(synk): dropout is eval-mode identity (PyTorch Dropout is a no-op at
    # inference); a training path would mask with pltpu.prng_seed/prng_random_bits.

    # fc2: (TB, 128)bf16 @ (128, 128)bf16 -> f32 accumulate (tiny, <1% of FLOPs).
    y = jnp.dot(h.astype(jnp.bfloat16), w2_ref[...],
                preferred_element_type=jnp.float32)
    # Lane-dense bf16 store (unmasked vst across 128 lanes).
    o_ref[...] = jax.nn.sigmoid(y + b2_ref[...]).astype(o_ref.dtype)


def prepare_params(w1, b1, w2, b2):
    """One-time param prep (transpose / pad / cast), hoisted out of the fwd path.

    w1: (100, 3072), b1: (100,), w2: (10, 100), b2: (10,)  [PyTorch layout]
    Returns:
      w1_t: (3072, 128) bf16, b1_p: (1, 128) f32,
      w2_t: (128, 128)  bf16, b2_p: (1, 128) f32.
    """
    w1_t = jnp.zeros((IN_FEATURES, HIDDEN_PAD), jnp.bfloat16)
    w1_t = w1_t.at[:, :HIDDEN].set(w1.T.astype(jnp.bfloat16))
    b1_p = jnp.zeros((1, HIDDEN_PAD), jnp.float32).at[0, :HIDDEN].set(b1)
    w2_t = jnp.zeros((HIDDEN_PAD, OUT_PAD), jnp.bfloat16)
    w2_t = w2_t.at[:HIDDEN, :OUT_FEATURES].set(w2.T.astype(jnp.bfloat16))
    b2_p = jnp.zeros((1, OUT_PAD), jnp.float32).at[0, :OUT_FEATURES].set(b2)
    return w1_t, b1_p, w2_t, b2_p


def _vmem_capacity_bytes():
    """Trace-time VMEM capacity query; conservative (v7x per-TC) fallback."""
    try:
        return int(pltpu.get_tpu_info().vmem_capacity_bytes)
    except Exception:
        return 64 << 20


def _choose_batch_tile(B, tb_max):
    """Pick (tb, n_tiles): tb a multiple of 16 rows, >=2 tiles when B allows
    (so v7x's two TensorCores both get work), minimal overhang padding."""
    if B <= 16:
        return B, 1                      # block == full array dim -> always legal
    n_target = max(2, pl.cdiv(B, tb_max))
    tb = ((pl.cdiv(B, n_target) + 15) // 16) * 16
    return tb, pl.cdiv(B, tb)


def net_forward(x_nchw, params):
    """x_nchw: (B, 3, 32, 32) float32. Returns (B, 10) float32."""
    w1_t, b1_p, w2_t, b2_p = params
    B = x_nchw.shape[0]

    # Same as torch .view(-1, 3072); contiguous NCHW -> free metadata reshape.
    # Stays f32 here: the bf16 cast happens inside the kernel.
    x = x_nchw.reshape(B, IN_FEATURES)

    vmem_cap = _vmem_capacity_bytes()
    big_vmem = vmem_cap >= (96 << 20)        # v5e/v6e (128 MiB) vs v7x (64 MiB)
    tb_max = 2048 if big_vmem else 1024
    tb, n_tiles = _choose_batch_tile(B, tb_max)

    # VMEM budget from the actual double-buffered tiles + resident weights.
    tile_bytes = (2 * tb * IN_FEATURES * 4            # x tile (f32) x2 buffers
                  + 2 * tb * OUT_PAD * 2              # out tile (bf16) x2 buffers
                  + 2 * IN_FEATURES * HIDDEN_PAD * 2  # w1 (bf16) buffers
                  + 2 * HIDDEN_PAD * OUT_PAD * 2      # w2 (bf16) buffers
                  + 4 * (HIDDEN_PAD + OUT_PAD) * 4)   # biases (f32) buffers
    vmem_budget = (100 << 20) if big_vmem else (48 << 20)
    vmem_limit = min(vmem_budget, tile_bytes + (8 << 20))

    cost = pl.CostEstimate(
        flops=2 * n_tiles * tb * (IN_FEATURES * HIDDEN_PAD + HIDDEN_PAD * OUT_PAD),
        transcendentals=n_tiles * tb * (HIDDEN_PAD + OUT_PAD),
        bytes_accessed=(B * IN_FEATURES * 4              # x (f32)
                        + IN_FEATURES * HIDDEN_PAD * 2   # w1 (bf16)
                        + HIDDEN_PAD * OUT_PAD * 2       # w2 (bf16)
                        + 2 * (HIDDEN_PAD + OUT_PAD) * 4 # biases
                        + B * OUT_PAD * 2),              # out (bf16)
    )

    out_padded = pl.pallas_call(
        mlp_kernel,
        out_shape=jax.ShapeDtypeStruct((B, OUT_PAD), jnp.bfloat16),
        grid_spec=pltpu.PrefetchScalarGridSpec(
            num_scalar_prefetch=0,
            grid=(n_tiles,),
            in_specs=[
                pl.BlockSpec((tb, IN_FEATURES), lambda i: (i, 0)),
                # Weights / biases: same block every step -> VMEM-resident.
                pl.BlockSpec((IN_FEATURES, HIDDEN_PAD), lambda i: (0, 0)),
                pl.BlockSpec((1, HIDDEN_PAD), lambda i: (0, 0)),
                pl.BlockSpec((HIDDEN_PAD, OUT_PAD), lambda i: (0, 0)),
                pl.BlockSpec((1, OUT_PAD), lambda i: (0, 0)),
            ],
            out_specs=pl.BlockSpec((tb, OUT_PAD), lambda i: (i, 0)),
        ),
        compiler_params=pltpu.CompilerParams(
            dimension_semantics=("parallel",),   # shard batch tiles across TCs
            vmem_limit_bytes=int(vmem_limit),
        ),
        cost_estimate=cost,
    )(x, w1_t, b1_p, w2_t, b2_p)

    # Module semantics: (B, 10) float32.
    return out_padded[:, :OUT_FEATURES].astype(jnp.float32)


def init_params(key):
    """nn.Linear-style init: weights (out, in), U(-1/sqrt(fan_in), 1/sqrt(fan_in))."""
    k1, k2, k3, k4 = jax.random.split(key, 4)
    bound1 = 1.0 / jnp.sqrt(IN_FEATURES)
    bound2 = 1.0 / jnp.sqrt(HIDDEN)
    w1 = jax.random.uniform(k1, (HIDDEN, IN_FEATURES), jnp.float32, -bound1, bound1)
    b1 = jax.random.uniform(k2, (HIDDEN,), jnp.float32, -bound1, bound1)
    w2 = jax.random.uniform(k3, (OUT_FEATURES, HIDDEN), jnp.float32, -bound2, bound2)
    b2 = jax.random.uniform(k4, (OUT_FEATURES,), jnp.float32, -bound2, bound2)
    return w1, b1, w2, b2


if __name__ == "__main__":
    key = jax.random.PRNGKey(0)
    k_x, k_p = jax.random.split(key)

    B = 8
    x = jax.random.normal(k_x, (B, 3, 32, 32), jnp.float32)   # NCHW like PyTorch
    w1, b1, w2, b2 = init_params(k_p)

    # Param prep (transpose / pad / cast) is done once, outside the forward path.
    params = prepare_params(w1, b1, w2, b2)

    fwd = jax.jit(lambda xx: net_forward(xx, params))
    out = jax.block_until_ready(fwd(x))

    # Reference in plain f32 JAX (same math as the PyTorch forward, eval mode).
    x_flat = x.reshape(B, IN_FEATURES)
    ref = jax.nn.sigmoid(jax.nn.sigmoid(x_flat @ w1.T + b1) @ w2.T + b2)

    assert out.shape == (B, OUT_FEATURES)
    # bf16 fc1/fc2 operands + bf16 output slab: honest post-sigmoid tolerance.
    max_err = float(jnp.max(jnp.abs(out - ref)))
    assert jnp.allclose(out, ref, atol=1e-2, rtol=0.0), f"max_err={max_err}"

    print("KERNEL_OK")
</pallas_src>

<mosaic_0001>
module attributes {stable_mosaic.version = 11 : i64} {
  func.func @mlp_kernel(%arg0: i32, %arg1: memref<8x3072xf32, #tpu.memory_space<vmem>>, %arg2: memref<3072x128xbf16, #tpu.memory_space<vmem>>, %arg3: memref<1x128xf32, #tpu.memory_space<vmem>>, %arg4: memref<128x128xbf16, #tpu.memory_space<vmem>>, %arg5: memref<1x128xf32, #tpu.memory_space<vmem>>, %arg6: memref<8x128xbf16, #tpu.memory_space<vmem>>) attributes {dimension_semantics = [#tpu.dimension_semantics<parallel>], iteration_bounds = array<i64: 1>, scalar_prefetch = 0 : i64, scratch_operands = 0 : i64, tpu.core_type = #tpu.core_type<tc>, window_params = [{transform_indices = @transform_0, window_bounds = array<i64: 8, 3072>}, {pipeline_mode = #tpu.pipeline_mode<synchronous>, transform_indices = @transform_1, window_bounds = array<i64: 3072, 128>}, {pipeline_mode = #tpu.pipeline_mode<synchronous>, transform_indices = @transform_2, window_bounds = array<i64: 1, 128>}, {pipeline_mode = #tpu.pipeline_mode<synchronous>, transform_indices = @transform_3, window_bounds = array<i64: 128, 128>}, {pipeline_mode = #tpu.pipeline_mode<synchronous>, transform_indices = @transform_4, window_bounds = array<i64: 1, 128>}, {transform_indices = @transform_5, window_bounds = array<i64: 8, 128>}]} {
    %c0 = arith.constant 0 : index
    %c0_0 = arith.constant 0 : index
    %0 = vector.load %arg1[%c0, %c0_0] : memref<8x3072xf32, #tpu.memory_space<vmem>>, vector<8x3072xf32>
    %1 = arith.truncf %0 : vector<8x3072xf32> to vector<8x3072xbf16>
    %c0_1 = arith.constant 0 : index
    %c0_2 = arith.constant 0 : index
    %2 = vector.load %arg2[%c0_1, %c0_2] : memref<3072x128xbf16, #tpu.memory_space<vmem>>, vector<3072x128xbf16>
    %cst = arith.constant dense<0.000000e+00> : vector<8x128xf32>
    %3 = tpu.matmul %1, %2, %cst {dimension_numbers = #tpu.dot_dimension_numbers<[1], [0], [0], [1], [0, 0, 1, 1], [], []>} : vector<8x3072xbf16>, vector<3072x128xbf16>, vector<8x128xf32> -> vector<8x128xf32>
    %c0_3 = arith.constant 0 : index
    %c0_4 = arith.constant 0 : index
    %4 = vector.load %arg3[%c0_3, %c0_4] : memref<1x128xf32, #tpu.memory_space<vmem>>, vector<1x128xf32>
    %5 = vector.broadcast %4 : vector<1x128xf32> to vector<8x128xf32>
    %6 = arith.addf %3, %5 : vector<8x128xf32>
    %7 = arith.negf %6 : vector<8x128xf32>
    %8 = math.exp %7 : vector<8x128xf32>
    %cst_5 = arith.constant 1.000000e+00 : f32
    %9 = vector.broadcast %cst_5 : f32 to vector<8x128xf32>
    %10 = arith.addf %9, %8 : vector<8x128xf32>
    %11 = arith.divf %9, %10 : vector<8x128xf32>
    %12 = arith.truncf %11 : vector<8x128xf32> to vector<8x128xbf16>
    %c0_6 = arith.constant 0 : index
    %c0_7 = arith.constant 0 : index
    %13 = vector.load %arg4[%c0_6, %c0_7] : memref<128x128xbf16, #tpu.memory_space<vmem>>, vector<128x128xbf16>
    %cst_8 = arith.constant dense<0.000000e+00> : vector<8x128xf32>
    %14 = tpu.matmul %12, %13, %cst_8 {dimension_numbers = #tpu.dot_dimension_numbers<[1], [0], [0], [1], [0, 0, 1, 1], [], []>} : vector<8x128xbf16>, vector<128x128xbf16>, vector<8x128xf32> -> vector<8x128xf32>
    %c0_9 = arith.constant 0 : index
    %c0_10 = arith.constant 0 : index
    %15 = vector.load %arg5[%c0_9, %c0_10] : memref<1x128xf32, #tpu.memory_space<vmem>>, vector<1x128xf32>
    %16 = vector.broadcast %15 : vector<1x128xf32> to vector<8x128xf32>
    %17 = arith.addf %14, %16 : vector<8x128xf32>
    %18 = arith.negf %17 : vector<8x128xf32>
    %19 = math.exp %18 : vector<8x128xf32>
    %cst_11 = arith.constant 1.000000e+00 : f32
    %20 = vector.broadcast %cst_11 : f32 to vector<8x128xf32>
    %21 = arith.addf %20, %19 : vector<8x128xf32>
    %22 = arith.divf %20, %21 : vector<8x128xf32>
    %23 = arith.truncf %22 : vector<8x128xf32> to vector<8x128xbf16>
    %c0_12 = arith.constant 0 : index
    %c0_13 = arith.constant 0 : index
    %24 = vector.load %arg6[%c0_12, %c0_13] : memref<8x128xbf16, #tpu.memory_space<vmem>>, vector<8x128xbf16>
    tpu.vector_store %arg6[%c0_12, %c0_13], %23 {strides = array<i32>} : memref<8x128xbf16, #tpu.memory_space<vmem>>, vector<8x128xbf16>,
    return
  }
  func.func @transform_0(%arg0: i32) -> (i32, i32) {
    %c0_i32 = arith.constant 0 : i32
    %c0_i32_0 = arith.constant 0 : i32
    return %arg0, %c0_i32 : i32, i32
  }
  func.func @transform_1(%arg0: i32) -> (i32, i32) {
    %c0_i32 = arith.constant 0 : i32
    %c0_i32_0 = arith.constant 0 : i32
    %c0_i32_1 = arith.constant 0 : i32
    return %c0_i32, %c0_i32_0 : i32, i32
  }
  func.func @transform_2(%arg0: i32) -> (i32, i32) {
    %c0_i32 = arith.constant 0 : i32
    %c0_i32_0 = arith.constant 0 : i32
    %c0_i32_1 = arith.constant 0 : i32
    return %c0_i32, %c0_i32_0 : i32, i32
  }
  func.func @transform_3(%arg0: i32) -> (i32, i32) {
    %c0_i32 = arith.constant 0 : i32
    %c0_i32_0 = arith.constant 0 : i32
    %c0_i32_1 = arith.constant 0 : i32
    return %c0_i32, %c0_i32_0 : i32, i32
  }
  func.func @transform_4(%arg0: i32) -> (i32, i32) {
    %c0_i32 = arith.constant 0 : i32
    %c0_i32_0 = arith.constant 0 : i32
    %c0_i32_1 = arith.constant 0 : i32
    return %c0_i32, %c0_i32_0 : i32, i32
  }
  func.func @transform_5(%arg0: i32) -> (i32, i32) {
    %c0_i32 = arith.constant 0 : i32
    %c0_i32_0 = arith.constant 0 : i32
    return %arg0, %c0_i32 : i32, i32
  }
}

</mosaic_0001>

<llo_original>
// kernel: _lambda_.1
$region0: #{_lambda_.1}
  #allocation0 [shape = 'u32[]', space=smem, size = 0x4, offset = 0x4, fixed_abs, tag = 'smem constant byte address 0x4 - core index']
  #allocation1 [shape = 'u32[72,128]{1,0:T(1,128)}', space=vmem, size = 0x9000, scoped, tag = 'internal scratch']
  %s0 = inlined_call_operand.vmem [shape: f32[8,3072], index: 0, kind: input, shape index: {}]
  %s1 = inlined_call_operand.hbm [shape: bf16[3072,128], index: 1, kind: input, shape index: {}]
  %s2 = inlined_call_operand.vmem [shape: f32[1,128], index: 2, kind: input, shape index: {}]
  %s3 = inlined_call_operand.vmem [shape: bf16[128,128], index: 3, kind: input, shape index: {}]
  %s4 = inlined_call_operand.vmem [shape: f32[1,128], index: 4, kind: input, shape index: {}]
  %s5 = inlined_call_operand.vmem [shape: bf16[8,128], index: 5, kind: output, shape index: {}]
  %s6 = sld [smem:[#allocation0]]
  $region34: #{_lambda_.1} parent=0
    _
  %s8 = ssub.s32 1, %s6
  %s9 = scalar_select 0, %s8, %s6
  $region1: #{_lambda_.1} parent=0
    #allocation2 [shape = 'u8[786432]{0}', space=vmem, size = 0xc0000, scoped, tag = 'input window, operand 1, single buffered']
    #allocation3 [shape = 's32[1]{0}', space=sflag, size = 0x4, scoped, tag = 'scoped memory for _lambda_.1']
    %10 = vsyncpa [#allocation3], 0
    // Predicated region
    $region2: #{_lambda_.1} parent=1 // pred_check
      _
    $region3: #{_lambda_.1} parent=1 // pred_check_branch
      %12 = sbr.rel (0) target = $region5
    $region4: #{_lambda_.1} parent=1 // pred_region
      _
    $region5: #{_lambda_.1} parent=1 // pred_fallthru
      _
    // Predicated region
    $region6: #{_lambda_.1} parent=1 // pred_check
      _
    $region7: #{_lambda_.1} parent=1 // pred_check_branch
      %14 = sbr.rel (0) target = $region9
    $region8: #{_lambda_.1} parent=1 // pred_region
      %16 = vsyncadd [#allocation3], 0
      %s17 = sshll.u32 %s1, 4
      %s18 = int_to_ptr.hbm [resolvable:$true] %s17
      %s19 = sshll.u32 [#allocation2], 4
      %s20 = int_to_ptr.vmem [resolvable:$true] %s19
      %25 = dma.hbm_to_vmem [thread:$0]  %s18, 24576, %s20, [#allocation3], 64, 64, 4
    $region9: #{_lambda_.1} parent=1 // pred_fallthru
      _
    // Predicated region
    $region10: #{_lambda_.1} parent=1 // pred_check
      _
    $region11: #{_lambda_.1} parent=1 // pred_check_branch
      %27 = sbr.rel (0) target = $region13
    $region12: #{_lambda_.1} parent=1 // pred_region
      _
    $region13: #{_lambda_.1} parent=1 // pred_fallthru
      _
    // Predicated region
    $region14: #{_lambda_.1} parent=1 // pred_check
      _
    $region15: #{_lambda_.1} parent=1 // pred_check_branch
      %29 = sbr.rel (0) target = $region17
    $region16: #{_lambda_.1} parent=1 // pred_region
      _
    $region17: #{_lambda_.1} parent=1 // pred_fallthru
      _
    // Predicated region
    $region18: #{_lambda_.1} parent=1 // pred_check
      _
    $region19: #{_lambda_.1} parent=1 // pred_check_branch
      %31 = sbr.rel (0) target = $region21
    $region20: #{_lambda_.1} parent=1 // pred_region
      _
    $region21: #{_lambda_.1} parent=1 // pred_fallthru
      _
    // Predicated region
    $region22: #{_lambda_.1} parent=1 // pred_check
      _
    $region23: #{_lambda_.1} parent=1 // pred_check_branch
      %33 = sbr.rel (0) target = $region25
    $region24: #{_lambda_.1} parent=1 // pred_region
      %35 = dma.done [#allocation3], 24576
    $region25: #{_lambda_.1} parent=1 // pred_fallthru
      _
    %v36 = vld [vmem:[%s0] sm:$0xff]
    %v37 = vld [vmem:[%s0 + $0x8] sm:$0xff]
    %v38 = vld [vmem:[%s0 + $0x10] sm:$0xff]
    %v39 = vld [vmem:[%s0 + $0x18] sm:$0xff]
    %v40 = vld [vmem:[%s0 + $0x20] sm:$0xff]
    %v41 = vld [vmem:[%s0 + $0x28] sm:$0xff]
    %v42 = vld [vmem:[%s0 + $0x30] sm:$0xff]
    %v43 = vld [vmem:[%s0 + $0x38] sm:$0xff]
    %v44 = vld [vmem:[%s0 + $0x40] sm:$0xff]
    %v45 = vld [vmem:[%s0 + $0x48] sm:$0xff]
    %v46 = vld [vmem:[%s0 + $0x50] sm:$0xff]
    %v47 = vld [vmem:[%s0 + $0x58] sm:$0xff]
    %v48 = vld [vmem:[%s0 + $0x60] sm:$0xff]
    %v49 = vld [vmem:[%s0 + $0x68] sm:$0xff]
    %v50 = vld [vmem:[%s0 + $0x70] sm:$0xff]
    %v51 = vld [vmem:[%s0 + $0x78] sm:$0xff]
    %v52 = vld [vmem:[%s0 + $0x80] sm:$0xff]
    %v53 = vld [vmem:[%s0 + $0x88] sm:$0xff]
    %v54 = vld [vmem:[%s0 + $0x90] sm:$0xff]
    %v55 = vld [vmem:[%s0 + $0x98] sm:$0xff]
    %v56 = vld [vmem:[%s0 + $0xa0] sm:$0xff]
    %v57 = vld [vmem:[%s0 + $0xa8] sm:$0xff]
    %v58 = vld [vmem:[%s0 + $0xb0] sm:$0xff]
    %v59 = vld [vmem:[%s0 + $0xb8] sm:$0xff]
    %v60 = vpack.c.bf16 %v36, %v36
    %v61 = vpack.c.bf16 %v37, %v37
    %v62 = vpack.c.bf16 %v38, %v38
    %v63 = vpack.c.bf16 %v39, %v39
    %v64 = vpack.c.bf16 %v40, %v40
    %v65 = vpack.c.bf16 %v41, %v41
    %v66 = vpack.c.bf16 %v42, %v42
    %v67 = vpack.c.bf16 %v43, %v43
    %v68 = vpack.c.bf16 %v44, %v44
    %v69 = vpack.c.bf16 %v45, %v45
    %v70 = vpack.c.bf16 %v46, %v46
    %v71 = vpack.c.bf16 %v47, %v47
    %v72 = vpack.c.bf16 %v48, %v48
    %v73 = vpack.c.bf16 %v49, %v49
    %v74 = vpack.c.bf16 %v50, %v50
    %v75 = vpack.c.bf16 %v51, %v51
    %v76 = vpack.c.bf16 %v52, %v52
    %v77 = vpack.c.bf16 %v53, %v53
    %v78 = vpack.c.bf16 %v54, %v54
    %v79 = vpack.c.bf16 %v55, %v55
    %v80 = vpack.c.bf16 %v56, %v56
    %v81 = vpack.c.bf16 %v57, %v57
    %v82 = vpack.c.bf16 %v58, %v58
    %v83 = vpack.c.bf16 %v59, %v59
    %v84 = vld [vmem:[#allocation2] sm:$0xf]
    %v85 = vld [vmem:[#allocation2 + $0x4] sm:$0xf]
    %v86 = vld [vmem:[#allocation2 + $0x8] sm:$0xf]
    %v87 = vld [vmem:[#allocation2 + $0xc] sm:$0xf]
    %v88 = vld [vmem:[#allocation2 + $0x10] sm:$0xf]
    %v89 = vld [vmem:[#allocation2 + $0x14] sm:$0xf]
    %v90 = vld [vmem:[#allocation2 + $0x18] sm:$0xf]
    %v91 = vld [vmem:[#allocation2 + $0x1c] sm:$0xf]
    %v92 = vld [vmem:[#allocation2 + $0x20] sm:$0xf]
    %v93 = vld [vmem:[#allocation2 + $0x24] sm:$0xf]
    %v94 = vld [vmem:[#allocation2 + $0x28] sm:$0xf]
    %v95 = vld [vmem:[#allocation2 + $0x2c] sm:$0xf]
    %v96 = vld [vmem:[#allocation2 + $0x30] sm:$0xf]
    %v97 = vld [vmem:[#allocation2 + $0x34] sm:$0xf]
    %v98 = vld [vmem:[#allocation2 + $0x38] sm:$0xf]
    %v99 = vld [vmem:[#allocation2 + $0x3c] sm:$0xf]
    %v100 = vld [vmem:[#allocation2 + $0x40] sm:$0xf]
    %v101 = vld [vmem:[#allocation2 + $0x44] sm:$0xf]
    %v102 = vld [vmem:[#allocation2 + $0x48] sm:$0xf]
    %v103 = vld [vmem:[#allocation2 + $0x4c] sm:$0xf]
    %v104 = vld [vmem:[#allocation2 + $0x50] sm:$0xf]
    %v105 = vld [vmem:[#allocation2 + $0x54] sm:$0xf]
    %v106 = vld [vmem:[#allocation2 + $0x58] sm:$0xf]
    %v107 = vld [vmem:[#allocation2 + $0x5c] sm:$0xf]
    %v108 = vld [vmem:[#allocation2 + $0x60] sm:$0xf]
    %v109 = vld [vmem:[#allocation2 + $0x64] sm:$0xf]
    %v110 = vld [vmem:[#allocation2 + $0x68] sm:$0xf]
    %v111 = vld [vmem:[#allocation2 + $0x6c] sm:$0xf]
    %v112 = vld [vmem:[#allocation2 + $0x70] sm:$0xf]
    %v113 = vld [vmem:[#allocation2 + $0x74] sm:$0xf]
    %v114 = vld [vmem:[#allocation2 + $0x78] sm:$0xf]
    %v115 = vld [vmem:[#allocation2 + $0x7c] sm:$0xf]
    %v116 = vld [vmem:[#allocation2 + $0x80] sm:$0xf]
    %v117 = vld [vmem:[#allocation2 + $0x84] sm:$0xf]
    %v118 = vld [vmem:[#allocation2 + $0x88] sm:$0xf]
    %v119 = vld [vmem:[#allocation2 + $0x8c] sm:$0xf]
    %v120 = vld [vmem:[#allocation2 + $0x90] sm:$0xf]
    %v121 = vld [vmem:[#allocation2 + $0x94] sm:$0xf]
    %v122 = vld [vmem:[#allocation2 + $0x98] sm:$0xf]
    %v123 = vld [vmem:[#allocation2 + $0x9c] sm:$0xf]
    %v124 = vld [vmem:[#allocation2 + $0xa0] sm:$0xf]
    %v125 = vld [vmem:[#allocation2 + $0xa4] sm:$0xf]
    %v126 = vld [vmem:[#allocation2 + $0xa8] sm:$0xf]
    %v127 = vld [vmem:[#allocation2 + $0xac] sm:$0xf]
    %v128 = vld [vmem:[#allocation2 + $0xb0] sm:$0xf]
    %v129 = vld [vmem:[#allocation2 + $0xb4] sm:$0xf]
    %v130 = vld [vmem:[#allocation2 + $0xb8] sm:$0xf]
    %v131 = vld [vmem:[#allocation2 + $0xbc] sm:$0xf]
    %v132 = vld [vmem:[#allocation2 + $0xc0] sm:$0xf]
    %v133 = vld [vmem:[#allocation2 + $0xc4] sm:$0xf]
    %v134 = vld [vmem:[#allocation2 + $0xc8] sm:$0xf]
    %v135 = vld [vmem:[#allocation2 + $0xcc] sm:$0xf]
    %v136 = vld [vmem:[#allocation2 + $0xd0] sm:$0xf]
    %v137 = vld [vmem:[#allocation2 + $0xd4] sm:$0xf]
    %v138 = vld [vmem:[#allocation2 + $0xd8] sm:$0xf]
    %v139 = vld [vmem:[#allocation2 + $0xdc] sm:$0xf]
    %v140 = vld [vmem:[#allocation2 + $0xe0] sm:$0xf]
    %v141 = vld [vmem:[#allocation2 + $0xe4] sm:$0xf]
    %v142 = vld [vmem:[#allocation2 + $0xe8] sm:$0xf]
    %v143 = vld [vmem:[#allocation2 + $0xec] sm:$0xf]
    %v144 = vld [vmem:[#allocation2 + $0xf0] sm:$0xf]
    %v145 = vld [vmem:[#allocation2 + $0xf4] sm:$0xf]
    %v146 = vld [vmem:[#allocation2 + $0xf8] sm:$0xf]
    %v147 = vld [vmem:[#allocation2 + $0xfc] sm:$0xf]
    %v148 = vld [vmem:[#allocation2 + $0x100] sm:$0xf]
    %v149 = vld [vmem:[#allocation2 + $0x104] sm:$0xf]
    %v150 = vld [vmem:[#allocation2 + $0x108] sm:$0xf]
    %v151 = vld [vmem:[#allocation2 + $0x10c] sm:$0xf]
    %v152 = vld [vmem:[#allocation2 + $0x110] sm:$0xf]
    %v153 = vld [vmem:[#allocation2 + $0x114] sm:$0xf]
    %v154 = vld [vmem:[#allocation2 + $0x118] sm:$0xf]
    %v155 = vld [vmem:[#allocation2 + $0x11c] sm:$0xf]
    %v156 = vld [vmem:[#allocation2 + $0x120] sm:$0xf]
    %v157 = vld [vmem:[#allocation2 + $0x124] sm:$0xf]
    %v158 = vld [vmem:[#allocation2 + $0x128] sm:$0xf]
    %v159 = vld [vmem:[#allocation2 + $0x12c] sm:$0xf]
    %v160 = vld [vmem:[#allocation2 + $0x130] sm:$0xf]
    %v161 = vld [vmem:[#allocation2 + $0x134] sm:$0xf]
    %v162 = vld [vmem:[#allocation2 + $0x138] sm:$0xf]
    %v163 = vld [vmem:[#allocation2 + $0x13c] sm:$0xf]
    %v164 = vld [vmem:[#allocation2 + $0x140] sm:$0xf]
    %v165 = vld [vmem:[#allocation2 + $0x144] sm:$0xf]
    %v166 = vld [vmem:[#allocation2 + $0x148] sm:$0xf]
    %v167 = vld [vmem:[#allocation2 + $0x14c] sm:$0xf]
    %v168 = vld [vmem:[#allocation2 + $0x150] sm:$0xf]
    %v169 = vld [vmem:[#allocation2 + $0x154] sm:$0xf]
    %v170 = vld [vmem:[#allocation2 + $0x158] sm:$0xf]
    %v171 = vld [vmem:[#allocation2 + $0x15c] sm:$0xf]
    %v172 = vld [vmem:[#allocation2 + $0x160] sm:$0xf]
    %v173 = vld [vmem:[#allocation2 + $0x164] sm:$0xf]
    %v174 = vld [vmem:[#allocation2 + $0x168] sm:$0xf]
    %v175 = vld [vmem:[#allocation2 + $0x16c] sm:$0xf]
    %v176 = vld [vmem:[#allocation2 + $0x170] sm:$0xf]
    %v177 = vld [vmem:[#allocation2 + $0x174] sm:$0xf]
    %v178 = vld [vmem:[#allocation2 + $0x178] sm:$0xf]
    %v179 = vld [vmem:[#allocation2 + $0x17c] sm:$0xf]
    %v180 = vld [vmem:[#allocation2 + $0x180] sm:$0xf]
    %v181 = vld [vmem:[#allocation2 + $0x184] sm:$0xf]
    %v182 = vld [vmem:[#allocation2 + $0x188] sm:$0xf]
    %v183 = vld [vmem:[#allocation2 + $0x18c] sm:$0xf]
    %v184 = vld [vmem:[#allocation2 + $0x190] sm:$0xf]
    %v185 = vld [vmem:[#allocation2 + $0x194] sm:$0xf]
    %v186 = vld [vmem:[#allocation2 + $0x198] sm:$0xf]
    %v187 = vld [vmem:[#allocation2 + $0x19c] sm:$0xf]
    %v188 = vld [vmem:[#allocation2 + $0x1a0] sm:$0xf]
    %v189 = vld [vmem:[#allocation2 + $0x1a4] sm:$0xf]
    %v190 = vld [vmem:[#allocation2 + $0x1a8] sm:$0xf]
    %v191 = vld [vmem:[#allocation2 + $0x1ac] sm:$0xf]
    %v192 = vld [vmem:[#allocation2 + $0x1b0] sm:$0xf]
    %v193 = vld [vmem:[#allocation2 + $0x1b4] sm:$0xf]
    %v194 = vld [vmem:[#allocation2 + $0x1b8] sm:$0xf]
    %v195 = vld [vmem:[#allocation2 + $0x1bc] sm:$0xf]
    %v196 = vld [vmem:[#allocation2 + $0x1c0] sm:$0xf]
    %v197 = vld [vmem:[#allocation2 + $0x1c4] sm:$0xf]
    %v198 = vld [vmem:[#allocation2 + $0x1c8] sm:$0xf]
    %v199 = vld [vmem:[#allocation2 + $0x1cc] sm:$0xf]
    %v200 = vld [vmem:[#allocation2 + $0x1d0] sm:$0xf]
    %v201 = vld [vmem:[#allocation2 + $0x1d4] sm:$0xf]
    %v202 = vld [vmem:[#allocation2 + $0x1d8] sm:$0xf]
    %v203 = vld [vmem:[#allocation2 + $0x1dc] sm:$0xf]
    %v204 = vld [vmem:[#allocation2 + $0x1e0] sm:$0xf]
    %v205 = vld [vmem:[#allocation2 + $0x1e4] sm:$0xf]
    %v206 = vld [vmem:[#allocation2 + $0x1e8] sm:$0xf]
    %v207 = vld [vmem:[#allocation2 + $0x1ec] sm:$0xf]
    %v208 = vld [vmem:[#allocation2 + $0x1f0] sm:$0xf]
    %v209 = vld [vmem:[#allocation2 + $0x1f4] sm:$0xf]
    %v210 = vld [vmem:[#allocation2 + $0x1f8] sm:$0xf]
    %v211 = vld [vmem:[#allocation2 + $0x1fc] sm:$0xf]
    %v212 = vld [vmem:[#allocation2 + $0x200] sm:$0xf]
    %v213 = vld [vmem:[#allocation2 + $0x204] sm:$0xf]
    %v214 = vld [vmem:[#allocation2 + $0x208] sm:$0xf]
    %v215 = vld [vmem:[#allocation2 + $0x20c] sm:$0xf]
    %v216 = vld [vmem:[#allocation2 + $0x210] sm:$0xf]
    %v217 = vld [vmem:[#allocation2 + $0x214] sm:$0xf]
    %v218 = vld [vmem:[#allocation2 + $0x218] sm:$0xf]
    %v219 = vld [vmem:[#allocation2 + $0x21c] sm:$0xf]
    %v220 = vld [vmem:[#allocation2 + $0x220] sm:$0xf]
    %v221 = vld [vmem:[#allocation2 + $0x224] sm:$0xf]
    %v222 = vld [vmem:[#allocation2 + $0x228] sm:$0xf]
    %v223 = vld [vmem:[#allocation2 + $0x22c] sm:$0xf]
    %v224 = vld [vmem:[#allocation2 + $0x230] sm:$0xf]
    %v225 = vld [vmem:[#allocation2 + $0x234] sm:$0xf]
    %v226 = vld [vmem:[#allocation2 + $0x238] sm:$0xf]
    %v227 = vld [vmem:[#allocation2 + $0x23c] sm:$0xf]
    %v228 = vld [vmem:[#allocation2 + $0x240] sm:$0xf]
    %v229 = vld [vmem:[#allocation2 + $0x244] sm:$0xf]
    %v230 = vld [vmem:[#allocation2 + $0x248] sm:$0xf]
    %v231 = vld [vmem:[#allocation2 + $0x24c] sm:$0xf]
    %v232 = vld [vmem:[#allocation2 + $0x250] sm:$0xf]
    %v233 = vld [vmem:[#allocation2 + $0x254] sm:$0xf]
    %v234 = vld [vmem:[#allocation2 + $0x258] sm:$0xf]
    %v235 = vld [vmem:[#allocation2 + $0x25c] sm:$0xf]
    %v236 = vld [vmem:[#allocation2 + $0x260] sm:$0xf]
    %v237 = vld [vmem:[#allocation2 + $0x264] sm:$0xf]
    %v238 = vld [vmem:[#allocation2 + $0x268] sm:$0xf]
    %v239 = vld [vmem:[#allocation2 + $0x26c] sm:$0xf]
    %v240 = vld [vmem:[#allocation2 + $0x270] sm:$0xf]
    %v241 = vld [vmem:[#allocation2 + $0x274] sm:$0xf]
    %v242 = vld [vmem:[#allocation2 + $0x278] sm:$0xf]
    %v243 = vld [vmem:[#allocation2 + $0x27c] sm:$0xf]
    %v244 = vld [vmem:[#allocation2 + $0x280] sm:$0xf]
    %v245 = vld [vmem:[#allocation2 + $0x284] sm:$0xf]
    %v246 = vld [vmem:[#allocation2 + $0x288] sm:$0xf]
    %v247 = vld [vmem:[#allocation2 + $0x28c] sm:$0xf]
    %v248 = vld [vmem:[#allocation2 + $0x290] sm:$0xf]
    %v249 = vld [vmem:[#allocation2 + $0x294] sm:$0xf]
    %v250 = vld [vmem:[#allocation2 + $0x298] sm:$0xf]
    %v251 = vld [vmem:[#allocation2 + $0x29c] sm:$0xf]
    %v252 = vld [vmem:[#allocation2 + $0x2a0] sm:$0xf]
    %v253 = vld [vmem:[#allocation2 + $0x2a4] sm:$0xf]
    %v254 = vld [vmem:[#allocation2 + $0x2a8] sm:$0xf]
    %v255 = vld [vmem:[#allocation2 + $0x2ac] sm:$0xf]
    %v256 = vld [vmem:[#allocation2 + $0x2b0] sm:$0xf]
    %v257 = vld [vmem:[#allocation2 + $0x2b4] sm:$0xf]
    %v258 = vld [vmem:[#allocation2 + $0x2b8] sm:$0xf]
    %v259 = vld [vmem:[#allocation2 + $0x2bc] sm:$0xf]
    %v260 = vld [vmem:[#allocation2 + $0x2c0] sm:$0xf]
    %v261 = vld [vmem:[#allocation2 + $0x2c4] sm:$0xf]
    %v262 = vld [vmem:[#allocation2 + $0x2c8] sm:$0xf]
    %v263 = vld [vmem:[#allocation2 + $0x2cc] sm:$0xf]
    %v264 = vld [vmem:[#allocation2 + $0x2d0] sm:$0xf]
    %v265 = vld [vmem:[#allocation2 + $0x2d4] sm:$0xf]
    %v266 = vld [vmem:[#allocation2 + $0x2d8] sm:$0xf]
    %v267 = vld [vmem:[#allocation2 + $0x2dc] sm:$0xf]
    %v268 = vld [vmem:[#allocation2 + $0x2e0] sm:$0xf]
    %v269 = vld [vmem:[#allocation2 + $0x2e4] sm:$0xf]
    %v270 = vld [vmem:[#allocation2 + $0x2e8] sm:$0xf]
    %v271 = vld [vmem:[#allocation2 + $0x2ec] sm:$0xf]
    %v272 = vld [vmem:[#allocation2 + $0x2f0] sm:$0xf]
    %v273 = vld [vmem:[#allocation2 + $0x2f4] sm:$0xf]
    %v274 = vld [vmem:[#allocation2 + $0x2f8] sm:$0xf]
    %v275 = vld [vmem:[#allocation2 + $0x2fc] sm:$0xf]
    %v276 = vld [vmem:[#allocation2 + $0x300] sm:$0xf]
    %v277 = vld [vmem:[#allocation2 + $0x304] sm:$0xf]
    %v278 = vld [vmem:[#allocation2 + $0x308] sm:$0xf]
    %v279 = vld [vmem:[#allocation2 + $0x30c] sm:$0xf]
    %v280 = vld [vmem:[#allocation2 + $0x310] sm:$0xf]
    %v281 = vld [vmem:[#allocation2 + $0x314] sm:$0xf]
    %v282 = vld [vmem:[#allocation2 + $0x318] sm:$0xf]
    %v283 = vld [vmem:[#allocation2 + $0x31c] sm:$0xf]
    %v284 = vld [vmem:[#allocation2 + $0x320] sm:$0xf]
    %v285 = vld [vmem:[#allocation2 + $0x324] sm:$0xf]
    %v286 = vld [vmem:[#allocation2 + $0x328] sm:$0xf]
    %v287 = vld [vmem:[#allocation2 + $0x32c] sm:$0xf]
    %v288 = vld [vmem:[#allocation2 + $0x330] sm:$0xf]
    %v289 = vld [vmem:[#allocation2 + $0x334] sm:$0xf]
    %v290 = vld [vmem:[#allocation2 + $0x338] sm:$0xf]
    %v291 = vld [vmem:[#allocation2 + $0x33c] sm:$0xf]
    %v292 = vld [vmem:[#allocation2 + $0x340] sm:$0xf]
    %v293 = vld [vmem:[#allocation2 + $0x344] sm:$0xf]
    %v294 = vld [vmem:[#allocation2 + $0x348] sm:$0xf]
    %v295 = vld [vmem:[#allocation2 + $0x34c] sm:$0xf]
    %v296 = vld [vmem:[#allocation2 + $0x350] sm:$0xf]
    %v297 = vld [vmem:[#allocation2 + $0x354] sm:$0xf]
    %v298 = vld [vmem:[#allocation2 + $0x358] sm:$0xf]
    %v299 = vld [vmem:[#allocation2 + $0x35c] sm:$0xf]
    %v300 = vld [vmem:[#allocation2 + $0x360] sm:$0xf]
    %v301 = vld [vmem:[#allocation2 + $0x364] sm:$0xf]
    %v302 = vld [vmem:[#allocation2 + $0x368] sm:$0xf]
    %v303 = vld [vmem:[#allocation2 + $0x36c] sm:$0xf]
    %v304 = vld [vmem:[#allocation2 + $0x370] sm:$0xf]
    %v305 = vld [vmem:[#allocation2 + $0x374] sm:$0xf]
    %v306 = vld [vmem:[#allocation2 + $0x378] sm:$0xf]
    %v307 = vld [vmem:[#allocation2 + $0x37c] sm:$0xf]
    %v308 = vld [vmem:[#allocation2 + $0x380] sm:$0xf]
    %v309 = vld [vmem:[#allocation2 + $0x384] sm:$0xf]
    %v310 = vld [vmem:[#allocation2 + $0x388] sm:$0xf]
    %v311 = vld [vmem:[#allocation2 + $0x38c] sm:$0xf]
    %v312 = vld [vmem:[#allocation2 + $0x390] sm:$0xf]
    %v313 = vld [vmem:[#allocation2 + $0x394] sm:$0xf]
    %v314 = vld [vmem:[#allocation2 + $0x398] sm:$0xf]
    %v315 = vld [vmem:[#allocation2 + $0x39c] sm:$0xf]
    %v316 = vld [vmem:[#allocation2 + $0x3a0] sm:$0xf]
    %v317 = vld [vmem:[#allocation2 + $0x3a4] sm:$0xf]
    %v318 = vld [vmem:[#allocation2 + $0x3a8] sm:$0xf]
    %v319 = vld [vmem:[#allocation2 + $0x3ac] sm:$0xf]
    %v320 = vld [vmem:[#allocation2 + $0x3b0] sm:$0xf]
    %v321 = vld [vmem:[#allocation2 + $0x3b4] sm:$0xf]
    %v322 = vld [vmem:[#allocation2 + $0x3b8] sm:$0xf]
    %v323 = vld [vmem:[#allocation2 + $0x3bc] sm:$0xf]
    %v324 = vld [vmem:[#allocation2 + $0x3c0] sm:$0xf]
    %v325 = vld [vmem:[#allocation2 + $0x3c4] sm:$0xf]
    %v326 = vld [vmem:[#allocation2 + $0x3c8] sm:$0xf]
    %v327 = vld [vmem:[#allocation2 + $0x3cc] sm:$0xf]
    %v328 = vld [vmem:[#allocation2 + $0x3d0] sm:$0xf]
    %v329 = vld [vmem:[#allocation2 + $0x3d4] sm:$0xf]
    %v330 = vld [vmem:[#allocation2 + $0x3d8] sm:$0xf]
    %v331 = vld [vmem:[#allocation2 + $0x3dc] sm:$0xf]
    %v332 = vld [vmem:[#allocation2 + $0x3e0] sm:$0xf]
    %v333 = vld [vmem:[#allocation2 + $0x3e4] sm:$0xf]
    %v334 = vld [vmem:[#allocation2 + $0x3e8] sm:$0xf]
    %v335 = vld [vmem:[#allocation2 + $0x3ec] sm:$0xf]
    %v336 = vld [vmem:[#allocation2 + $0x3f0] sm:$0xf]
    %v337 = vld [vmem:[#allocation2 + $0x3f4] sm:$0xf]
    %v338 = vld [vmem:[#allocation2 + $0x3f8] sm:$0xf]
    %v339 = vld [vmem:[#allocation2 + $0x3fc] sm:$0xf]
    %v340 = vld [vmem:[#allocation2 + $0x400] sm:$0xf]
    %v341 = vld [vmem:[#allocation2 + $0x404] sm:$0xf]
    %v342 = vld [vmem:[#allocation2 + $0x408] sm:$0xf]
    %v343 = vld [vmem:[#allocation2 + $0x40c] sm:$0xf]
    %v344 = vld [vmem:[#allocation2 + $0x410] sm:$0xf]
    %v345 = vld [vmem:[#allocation2 + $0x414] sm:$0xf]
    %v346 = vld [vmem:[#allocation2 + $0x418] sm:$0xf]
    %v347 = vld [vmem:[#allocation2 + $0x41c] sm:$0xf]
    %v348 = vld [vmem:[#allocation2 + $0x420] sm:$0xf]
    %v349 = vld [vmem:[#allocation2 + $0x424] sm:$0xf]
    %v350 = vld [vmem:[#allocation2 + $0x428] sm:$0xf]
    %v351 = vld [vmem:[#allocation2 + $0x42c] sm:$0xf]
    %v352 = vld [vmem:[#allocation2 + $0x430] sm:$0xf]
    %v353 = vld [vmem:[#allocation2 + $0x434] sm:$0xf]
    %v354 = vld [vmem:[#allocation2 + $0x438] sm:$0xf]
    %v355 = vld [vmem:[#allocation2 + $0x43c] sm:$0xf]
    %v356 = vld [vmem:[#allocation2 + $0x440] sm:$0xf]
    %v357 = vld [vmem:[#allocation2 + $0x444] sm:$0xf]
    %v358 = vld [vmem:[#allocation2 + $0x448] sm:$0xf]
    %v359 = vld [vmem:[#allocation2 + $0x44c] sm:$0xf]
    %v360 = vld [vmem:[#allocation2 + $0x450] sm:$0xf]
    %v361 = vld [vmem:[#allocation2 + $0x454] sm:$0xf]
    %v362 = vld [vmem:[#allocation2 + $0x458] sm:$0xf]
    %v363 = vld [vmem:[#allocation2 + $0x45c] sm:$0xf]
    %v364 = vld [vmem:[#allocation2 + $0x460] sm:$0xf]
    %v365 = vld [vmem:[#allocation2 + $0x464] sm:$0xf]
    %v366 = vld [vmem:[#allocation2 + $0x468] sm:$0xf]
    %v367 = vld [vmem:[#allocation2 + $0x46c] sm:$0xf]
    %v368 = vld [vmem:[#allocation2 + $0x470] sm:$0xf]
    %v369 = vld [vmem:[#allocation2 + $0x474] sm:$0xf]
    %v370 = vld [vmem:[#allocation2 + $0x478] sm:$0xf]
    %v371 = vld [vmem:[#allocation2 + $0x47c] sm:$0xf]
    %v372 = vld [vmem:[#allocation2 + $0x480] sm:$0xf]
    %v373 = vld [vmem:[#allocation2 + $0x484] sm:$0xf]
    %v374 = vld [vmem:[#allocation2 + $0x488] sm:$0xf]
    %v375 = vld [vmem:[#allocation2 + $0x48c] sm:$0xf]
    %v376 = vld [vmem:[#allocation2 + $0x490] sm:$0xf]
    %v377 = vld [vmem:[#allocation2 + $0x494] sm:$0xf]
    %v378 = vld [vmem:[#allocation2 + $0x498] sm:$0xf]
    %v379 = vld [vmem:[#allocation2 + $0x49c] sm:$0xf]
    %v380 = vld [vmem:[#allocation2 + $0x4a0] sm:$0xf]
    %v381 = vld [vmem:[#allocation2 + $0x4a4] sm:$0xf]
    %v382 = vld [vmem:[#allocation2 + $0x4a8] sm:$0xf]
    %v383 = vld [vmem:[#allocation2 + $0x4ac] sm:$0xf]
    %v384 = vld [vmem:[#allocation2 + $0x4b0] sm:$0xf]
    %v385 = vld [vmem:[#allocation2 + $0x4b4] sm:$0xf]
    %v386 = vld [vmem:[#allocation2 + $0x4b8] sm:$0xf]
    %v387 = vld [vmem:[#allocation2 + $0x4bc] sm:$0xf]
    %v388 = vld [vmem:[#allocation2 + $0x4c0] sm:$0xf]
    %v389 = vld [vmem:[#allocation2 + $0x4c4] sm:$0xf]
    %v390 = vld [vmem:[#allocation2 + $0x4c8] sm:$0xf]
    %v391 = vld [vmem:[#allocation2 + $0x4cc] sm:$0xf]
    %v392 = vld [vmem:[#allocation2 + $0x4d0] sm:$0xf]
    %v393 = vld [vmem:[#allocation2 + $0x4d4] sm:$0xf]
    %v394 = vld [vmem:[#allocation2 + $0x4d8] sm:$0xf]
    %v395 = vld [vmem:[#allocation2 + $0x4dc] sm:$0xf]
    %v396 = vld [vmem:[#allocation2 + $0x4e0] sm:$0xf]
    %v397 = vld [vmem:[#allocation2 + $0x4e4] sm:$0xf]
    %v398 = vld [vmem:[#allocation2 + $0x4e8] sm:$0xf]
    %v399 = vld [vmem:[#allocation2 + $0x4ec] sm:$0xf]
    %v400 = vld [vmem:[#allocation2 + $0x4f0] sm:$0xf]
    %v401 = vld [vmem:[#allocation2 + $0x4f4] sm:$0xf]
    %v402 = vld [vmem:[#allocation2 + $0x4f8] sm:$0xf]
    %v403 = vld [vmem:[#allocation2 + $0x4fc] sm:$0xf]
    %v404 = vld [vmem:[#allocation2 + $0x500] sm:$0xf]
    %v405 = vld [vmem:[#allocation2 + $0x504] sm:$0xf]
    %v406 = vld [vmem:[#allocation2 + $0x508] sm:$0xf]
    %v407 = vld [vmem:[#allocation2 + $0x50c] sm:$0xf]
    %v408 = vld [vmem:[#allocation2 + $0x510] sm:$0xf]
    %v409 = vld [vmem:[#allocation2 + $0x514] sm:$0xf]
    %v410 = vld [vmem:[#allocation2 + $0x518] sm:$0xf]
    %v411 = vld [vmem:[#allocation2 + $0x51c] sm:$0xf]
    %v412 = vld [vmem:[#allocation2 + $0x520] sm:$0xf]
    %v413 = vld [vmem:[#allocation2 + $0x524] sm:$0xf]
    %v414 = vld [vmem:[#allocation2 + $0x528] sm:$0xf]
    %v415 = vld [vmem:[#allocation2 + $0x52c] sm:$0xf]
    %v416 = vld [vmem:[#allocation2 + $0x530] sm:$0xf]
    %v417 = vld [vmem:[#allocation2 + $0x534] sm:$0xf]
    %v418 = vld [vmem:[#allocation2 + $0x538] sm:$0xf]
    %v419 = vld [vmem:[#allocation2 + $0x53c] sm:$0xf]
    %v420 = vld [vmem:[#allocation2 + $0x540] sm:$0xf]
    %v421 = vld [vmem:[#allocation2 + $0x544] sm:$0xf]
    %v422 = vld [vmem:[#allocation2 + $0x548] sm:$0xf]
    %v423 = vld [vmem:[#allocation2 + $0x54c] sm:$0xf]
    %v424 = vld [vmem:[#allocation2 + $0x550] sm:$0xf]
    %v425 = vld [vmem:[#allocation2 + $0x554] sm:$0xf]
    %v426 = vld [vmem:[#allocation2 + $0x558] sm:$0xf]
    %v427 = vld [vmem:[#allocation2 + $0x55c] sm:$0xf]
    %v428 = vld [vmem:[#allocation2 + $0x560] sm:$0xf]
    %v429 = vld [vmem:[#allocation2 + $0x564] sm:$0xf]
    %v430 = vld [vmem:[#allocation2 + $0x568] sm:$0xf]
    %v431 = vld [vmem:[#allocation2 + $0x56c] sm:$0xf]
    %v432 = vld [vmem:[#allocation2 + $0x570] sm:$0xf]
    %v433 = vld [vmem:[#allocation2 + $0x574] sm:$0xf]
    %v434 = vld [vmem:[#allocation2 + $0x578] sm:$0xf]
    %v435 = vld [vmem:[#allocation2 + $0x57c] sm:$0xf]
    %v436 = vld [vmem:[#allocation2 + $0x580] sm:$0xf]
    %v437 = vld [vmem:[#allocation2 + $0x584] sm:$0xf]
    %v438 = vld [vmem:[#allocation2 + $0x588] sm:$0xf]
    %v439 = vld [vmem:[#allocation2 + $0x58c] sm:$0xf]
    %v440 = vld [vmem:[#allocation2 + $0x590] sm:$0xf]
    %v441 = vld [vmem:[#allocation2 + $0x594] sm:$0xf]
    %v442 = vld [vmem:[#allocation2 + $0x598] sm:$0xf]
    %v443 = vld [vmem:[#allocation2 + $0x59c] sm:$0xf]
    %v444 = vld [vmem:[#allocation2 + $0x5a0] sm:$0xf]
    %v445 = vld [vmem:[#allocation2 + $0x5a4] sm:$0xf]
    %v446 = vld [vmem:[#allocation2 + $0x5a8] sm:$0xf]
    %v447 = vld [vmem:[#allocation2 + $0x5ac] sm:$0xf]
    %v448 = vld [vmem:[#allocation2 + $0x5b0] sm:$0xf]
    %v449 = vld [vmem:[#allocation2 + $0x5b4] sm:$0xf]
    %v450 = vld [vmem:[#allocation2 + $0x5b8] sm:$0xf]
    %v451 = vld [vmem:[#allocation2 + $0x5bc] sm:$0xf]
    %v452 = vld [vmem:[#allocation2 + $0x5c0] sm:$0xf]
    %v453 = vld [vmem:[#allocation2 + $0x5c4] sm:$0xf]
    %v454 = vld [vmem:[#allocation2 + $0x5c8] sm:$0xf]
    %v455 = vld [vmem:[#allocation2 + $0x5cc] sm:$0xf]
    %v456 = vld [vmem:[#allocation2 + $0x5d0] sm:$0xf]
    %v457 = vld [vmem:[#allocation2 + $0x5d4] sm:$0xf]
    %v458 = vld [vmem:[#allocation2 + $0x5d8] sm:$0xf]
    %v459 = vld [vmem:[#allocation2 + $0x5dc] sm:$0xf]
    %v460 = vld [vmem:[#allocation2 + $0x5e0] sm:$0xf]
    %v461 = vld [vmem:[#allocation2 + $0x5e4] sm:$0xf]
    %v462 = vld [vmem:[#allocation2 + $0x5e8] sm:$0xf]
    %v463 = vld [vmem:[#allocation2 + $0x5ec] sm:$0xf]
    %v464 = vld [vmem:[#allocation2 + $0x5f0] sm:$0xf]
    %v465 = vld [vmem:[#allocation2 + $0x5f4] sm:$0xf]
    %v466 = vld [vmem:[#allocation2 + $0x5f8] sm:$0xf]
    %v467 = vld [vmem:[#allocation2 + $0x5fc] sm:$0xf]
    %v468 = vld [vmem:[%s2] sm:$0x1]
    %v470 = vperm.slane %v468, 0
    %v856 = vunpack.c.l.b16 %v84
    %v857 = vunpack.c.l.b16 %v85
    %v858 = vunpack.c.l.b16 %v86
    %v859 = vunpack.c.l.b16 %v87
    %v860 = vunpack.c.l.b16 %v88
    %v861 = vunpack.c.l.b16 %v89
    %v862 = vunpack.c.l.b16 %v90
    %v863 = vunpack.c.l.b16 %v91
    %v864 = vunpack.c.l.b16 %v92
    %v865 = vunpack.c.l.b16 %v93
    %v866 = vunpack.c.l.b16 %v94
    %v867 = vunpack.c.l.b16 %v95
    %v868 = vunpack.c.l.b16 %v96
    %v869 = vunpack.c.l.b16 %v97
    %v870 = vunpack.c.l.b16 %v98
    %v871 = vunpack.c.l.b16 %v99
    %v872 = vunpack.c.l.b16 %v100
    %v873 = vunpack.c.l.b16 %v101
    %v874 = vunpack.c.l.b16 %v102
    %v875 = vunpack.c.l.b16 %v103
    %v876 = vunpack.c.l.b16 %v104
    %v877 = vunpack.c.l.b16 %v105
    %v878 = vunpack.c.l.b16 %v106
    %v879 = vunpack.c.l.b16 %v107
    %v880 = vunpack.c.l.b16 %v108
    %v881 = vunpack.c.l.b16 %v109
    %v882 = vunpack.c.l.b16 %v110
    %v883 = vunpack.c.l.b16 %v111
    %v884 = vunpack.c.l.b16 %v112
    %v885 = vunpack.c.l.b16 %v113
    %v886 = vunpack.c.l.b16 %v114
    %v887 = vunpack.c.l.b16 %v115
    %v888 = vunpack.c.l.b16 %v116
    %v889 = vunpack.c.l.b16 %v117
    %v890 = vunpack.c.l.b16 %v118
    %v891 = vunpack.c.l.b16 %v119
    %v892 = vunpack.c.l.b16 %v120
    %v893 = vunpack.c.l.b16 %v121
    %v894 = vunpack.c.l.b16 %v122
    %v895 = vunpack.c.l.b16 %v123
    %v896 = vunpack.c.l.b16 %v124
    %v897 = vunpack.c.l.b16 %v125
    %v898 = vunpack.c.l.b16 %v126
    %v899 = vunpack.c.l.b16 %v127
    %v900 = vunpack.c.l.b16 %v128
    %v901 = vunpack.c.l.b16 %v129
    %v902 = vunpack.c.l.b16 %v130
    %v903 = vunpack.c.l.b16 %v131
    %v904 = vunpack.c.l.b16 %v132
    %v905 = vunpack.c.l.b16 %v133
    %v906 = vunpack.c.l.b16 %v134
    %v907 = vunpack.c.l.b16 %v135
    %v908 = vunpack.c.l.b16 %v136
    %v909 = vunpack.c.l.b16 %v137
    %v910 = vunpack.c.l.b16 %v138
    %v911 = vunpack.c.l.b16 %v139
    %v912 = vunpack.c.l.b16 %v140
    %v913 = vunpack.c.l.b16 %v141
    %v914 = vunpack.c.l.b16 %v142
    %v915 = vunpack.c.l.b16 %v143
    %v916 = vunpack.c.l.b16 %v144
    %v917 = vunpack.c.l.b16 %v145
    %v918 = vunpack.c.l.b16 %v146
    %v919 = vunpack.c.l.b16 %v147
    %v920 = vunpack.c.l.b16 %v148
    %v921 = vunpack.c.l.b16 %v149
    %v922 = vunpack.c.l.b16 %v150
    %v923 = vunpack.c.l.b16 %v151
    %v924 = vunpack.c.l.b16 %v152
    %v925 = vunpack.c.l.b16 %v153
    %v926 = vunpack.c.l.b16 %v154
    %v927 = vunpack.c.l.b16 %v155
    %v928 = vunpack.c.l.b16 %v156
    %v929 = vunpack.c.l.b16 %v157
    %v930 = vunpack.c.l.b16 %v158
    %v931 = vunpack.c.l.b16 %v159
    %v932 = vunpack.c.l.b16 %v160
    %v933 = vunpack.c.l.b16 %v161
    %v934 = vunpack.c.l.b16 %v162
    %v935 = vunpack.c.l.b16 %v163
    %v936 = vunpack.c.l.b16 %v164
    %v937 = vunpack.c.l.b16 %v165
    %v938 = vunpack.c.l.b16 %v166
    %v939 = vunpack.c.l.b16 %v167
    %v940 = vunpack.c.l.b16 %v168
    %v941 = vunpack.c.l.b16 %v169
    %v942 = vunpack.c.l.b16 %v170
    %v943 = vunpack.c.l.b16 %v171
    %v944 = vunpack.c.l.b16 %v172
    %v945 = vunpack.c.l.b16 %v173
    %v946 = vunpack.c.l.b16 %v174
    %v947 = vunpack.c.l.b16 %v175
    %v948 = vunpack.c.l.b16 %v176
    %v949 = vunpack.c.l.b16 %v177
    %v950 = vunpack.c.l.b16 %v178
    %v951 = vunpack.c.l.b16 %v179
    %v952 = vunpack.c.l.b16 %v180
    %v953 = vunpack.c.l.b16 %v181
    %v954 = vunpack.c.l.b16 %v182
    %v955 = vunpack.c.l.b16 %v183
    %v956 = vunpack.c.l.b16 %v184
    %v957 = vunpack.c.l.b16 %v185
    %v958 = vunpack.c.l.b16 %v186
    %v959 = vunpack.c.l.b16 %v187
    %v960 = vunpack.c.l.b16 %v188
    %v961 = vunpack.c.l.b16 %v189
    %v962 = vunpack.c.l.b16 %v190
    %v963 = vunpack.c.l.b16 %v191
    %v964 = vunpack.c.l.b16 %v192
    %v965 = vunpack.c.l.b16 %v193
    %v966 = vunpack.c.l.b16 %v194
    %v967 = vunpack.c.l.b16 %v195
    %v968 = vunpack.c.l.b16 %v196
    %v969 = vunpack.c.l.b16 %v197
    %v970 = vunpack.c.l.b16 %v198
    %v971 = vunpack.c.l.b16 %v199
    %v972 = vunpack.c.l.b16 %v200
    %v973 = vunpack.c.l.b16 %v201
    %v974 = vunpack.c.l.b16 %v202
    %v975 = vunpack.c.l.b16 %v203
    %v976 = vunpack.c.l.b16 %v204
    %v977 = vunpack.c.l.b16 %v205
    %v978 = vunpack.c.l.b16 %v206
    %v979 = vunpack.c.l.b16 %v207
    %v980 = vunpack.c.l.b16 %v208
    %v981 = vunpack.c.l.b16 %v209
    %v982 = vunpack.c.l.b16 %v210
    %v983 = vunpack.c.l.b16 %v211
    %v984 = vunpack.c.l.b16 %v212
    %v985 = vunpack.c.l.b16 %v213
    %v986 = vunpack.c.l.b16 %v214
    %v987 = vunpack.c.l.b16 %v215
    %v988 = vunpack.c.l.b16 %v216
    %v989 = vunpack.c.l.b16 %v217
    %v990 = vunpack.c.l.b16 %v218
    %v991 = vunpack.c.l.b16 %v219
    %v992 = vunpack.c.l.b16 %v220
    %v993 = vunpack.c.l.b16 %v221
    %v994 = vunpack.c.l.b16 %v222
    %v995 = vunpack.c.l.b16 %v223
    %v996 = vunpack.c.l.b16 %v224
    %v997 = vunpack.c.l.b16 %v225
    %v998 = vunpack.c.l.b16 %v226
    %v999 = vunpack.c.l.b16 %v227
    %v1000 = vunpack.c.l.b16 %v228
    %v1001 = vunpack.c.l.b16 %v229
    %v1002 = vunpack.c.l.b16 %v230
    %v1003 = vunpack.c.l.b16 %v231
    %v1004 = vunpack.c.l.b16 %v232
    %v1005 = vunpack.c.l.b16 %v233
    %v1006 = vunpack.c.l.b16 %v234
    %v1007 = vunpack.c.l.b16 %v235
    %v1008 = vunpack.c.l.b16 %v236
    %v1009 = vunpack.c.l.b16 %v237
    %v1010 = vunpack.c.l.b16 %v238
    %v1011 = vunpack.c.l.b16 %v239
    %v1012 = vunpack.c.l.b16 %v240
    %v1013 = vunpack.c.l.b16 %v241
    %v1014 = vunpack.c.l.b16 %v242
    %v1015 = vunpack.c.l.b16 %v243
    %v1016 = vunpack.c.l.b16 %v244
    %v1017 = vunpack.c.l.b16 %v245
    %v1018 = vunpack.c.l.b16 %v246
    %v1019 = vunpack.c.l.b16 %v247
    %v1020 = vunpack.c.l.b16 %v248
    %v1021 = vunpack.c.l.b16 %v249
    %v1022 = vunpack.c.l.b16 %v250
    %v1023 = vunpack.c.l.b16 %v251
    %v1024 = vunpack.c.l.b16 %v252
    %v1025 = vunpack.c.l.b16 %v253
    %v1026 = vunpack.c.l.b16 %v254
    %v1027 = vunpack.c.l.b16 %v255
    %v1028 = vunpack.c.l.b16 %v256
    %v1029 = vunpack.c.l.b16 %v257
    %v1030 = vunpack.c.l.b16 %v258
    %v1031 = vunpack.c.l.b16 %v259
    %v1032 = vunpack.c.l.b16 %v260
    %v1033 = vunpack.c.l.b16 %v261
    %v1034 = vunpack.c.l.b16 %v262
    %v1035 = vunpack.c.l.b16 %v263
    %v1036 = vunpack.c.l.b16 %v264
    %v1037 = vunpack.c.l.b16 %v265
    %v1038 = vunpack.c.l.b16 %v266
    %v1039 = vunpack.c.l.b16 %v267
    %v1040 = vunpack.c.l.b16 %v268
    %v1041 = vunpack.c.l.b16 %v269
    %v1042 = vunpack.c.l.b16 %v270
    %v1043 = vunpack.c.l.b16 %v271
    %v1044 = vunpack.c.l.b16 %v272
    %v1045 = vunpack.c.l.b16 %v273
    %v1046 = vunpack.c.l.b16 %v274
    %v1047 = vunpack.c.l.b16 %v275
    %v1048 = vunpack.c.l.b16 %v276
    %v1049 = vunpack.c.l.b16 %v277
    %v1050 = vunpack.c.l.b16 %v278
    %v1051 = vunpack.c.l.b16 %v279
    %v1052 = vunpack.c.l.b16 %v280
    %v1053 = vunpack.c.l.b16 %v281
    %v1054 = vunpack.c.l.b16 %v282
    %v1055 = vunpack.c.l.b16 %v283
    %v1056 = vunpack.c.l.b16 %v284
    %v1057 = vunpack.c.l.b16 %v285
    %v1058 = vunpack.c.l.b16 %v286
    %v1059 = vunpack.c.l.b16 %v287
    %v1060 = vunpack.c.l.b16 %v288
    %v1061 = vunpack.c.l.b16 %v289
    %v1062 = vunpack.c.l.b16 %v290
    %v1063 = vunpack.c.l.b16 %v291
    %v1064 = vunpack.c.l.b16 %v292
    %v1065 = vunpack.c.l.b16 %v293
    %v1066 = vunpack.c.l.b16 %v294
    %v1067 = vunpack.c.l.b16 %v295
    %v1068 = vunpack.c.l.b16 %v296
    %v1069 = vunpack.c.l.b16 %v297
    %v1070 = vunpack.c.l.b16 %v298
    %v1071 = vunpack.c.l.b16 %v299
    %v1072 = vunpack.c.l.b16 %v300
    %v1073 = vunpack.c.l.b16 %v301
    %v1074 = vunpack.c.l.b16 %v302
    %v1075 = vunpack.c.l.b16 %v303
    %v1076 = vunpack.c.l.b16 %v304
    %v1077 = vunpack.c.l.b16 %v305
    %v1078 = vunpack.c.l.b16 %v306
    %v1079 = vunpack.c.l.b16 %v307
    %v1080 = vunpack.c.l.b16 %v308
    %v1081 = vunpack.c.l.b16 %v309
    %v1082 = vunpack.c.l.b16 %v310
    %v1083 = vunpack.c.l.b16 %v311
    %v1084 = vunpack.c.l.b16 %v312
    %v1085 = vunpack.c.l.b16 %v313
    %v1086 = vunpack.c.l.b16 %v314
    %v1087 = vunpack.c.l.b16 %v315
    %v1088 = vunpack.c.l.b16 %v316
    %v1089 = vunpack.c.l.b16 %v317
    %v1090 = vunpack.c.l.b16 %v318
    %v1091 = vunpack.c.l.b16 %v319
    %v1092 = vunpack.c.l.b16 %v320
    %v1093 = vunpack.c.l.b16 %v321
    %v1094 = vunpack.c.l.b16 %v322
    %v1095 = vunpack.c.l.b16 %v323
    %v1096 = vunpack.c.l.b16 %v324
    %v1097 = vunpack.c.l.b16 %v325
    %v1098 = vunpack.c.l.b16 %v326
    %v1099 = vunpack.c.l.b16 %v327
    %v1100 = vunpack.c.l.b16 %v328
    %v1101 = vunpack.c.l.b16 %v329
    %v1102 = vunpack.c.l.b16 %v330
    %v1103 = vunpack.c.l.b16 %v331
    %v1104 = vunpack.c.l.b16 %v332
    %v1105 = vunpack.c.l.b16 %v333
    %v1106 = vunpack.c.l.b16 %v334
    %v1107 = vunpack.c.l.b16 %v335
    %v1108 = vunpack.c.l.b16 %v336
    %v1109 = vunpack.c.l.b16 %v337
    %v1110 = vunpack.c.l.b16 %v338
    %v1111 = vunpack.c.l.b16 %v339
    %v1112 = vunpack.c.l.b16 %v340
    %v1113 = vunpack.c.l.b16 %v341
    %v1114 = vunpack.c.l.b16 %v342
    %v1115 = vunpack.c.l.b16 %v343
    %v1116 = vunpack.c.l.b16 %v344
    %v1117 = vunpack.c.l.b16 %v345
    %v1118 = vunpack.c.l.b16 %v346
    %v1119 = vunpack.c.l.b16 %v347
    %v1120 = vunpack.c.l.b16 %v348
    %v1121 = vunpack.c.l.b16 %v349
    %v1122 = vunpack.c.l.b16 %v350
    %v1123 = vunpack.c.l.b16 %v351
    %v1124 = vunpack.c.l.b16 %v352
    %v1125 = vunpack.c.l.b16 %v353
    %v1126 = vunpack.c.l.b16 %v354
    %v1127 = vunpack.c.l.b16 %v355
    %v1128 = vunpack.c.l.b16 %v356
    %v1129 = vunpack.c.l.b16 %v357
    %v1130 = vunpack.c.l.b16 %v358
    %v1131 = vunpack.c.l.b16 %v359
    %v1132 = vunpack.c.l.b16 %v360
    %v1133 = vunpack.c.l.b16 %v361
    %v1134 = vunpack.c.l.b16 %v362
    %v1135 = vunpack.c.l.b16 %v363
    %v1136 = vunpack.c.l.b16 %v364
    %v1137 = vunpack.c.l.b16 %v365
    %v1138 = vunpack.c.l.b16 %v366
    %v1139 = vunpack.c.l.b16 %v367
    %v1140 = vunpack.c.l.b16 %v368
    %v1141 = vunpack.c.l.b16 %v369
    %v1142 = vunpack.c.l.b16 %v370
    %v1143 = vunpack.c.l.b16 %v371
    %v1144 = vunpack.c.l.b16 %v372
    %v1145 = vunpack.c.l.b16 %v373
    %v1146 = vunpack.c.l.b16 %v374
    %v1147 = vunpack.c.l.b16 %v375
    %v1148 = vunpack.c.l.b16 %v376
    %v1149 = vunpack.c.l.b16 %v377
    %v1150 = vunpack.c.l.b16 %v378
    %v1151 = vunpack.c.l.b16 %v379
    %v1152 = vunpack.c.l.b16 %v380
    %v1153 = vunpack.c.l.b16 %v381
    %v1154 = vunpack.c.l.b16 %v382
    %v1155 = vunpack.c.l.b16 %v383
    %v1156 = vunpack.c.l.b16 %v384
    %v1157 = vunpack.c.l.b16 %v385
    %v1158 = vunpack.c.l.b16 %v386
    %v1159 = vunpack.c.l.b16 %v387
    %v1160 = vunpack.c.l.b16 %v388
    %v1161 = vunpack.c.l.b16 %v389
    %v1162 = vunpack.c.l.b16 %v390
    %v1163 = vunpack.c.l.b16 %v391
    %v1164 = vunpack.c.l.b16 %v392
    %v1165 = vunpack.c.l.b16 %v393
    %v1166 = vunpack.c.l.b16 %v394
    %v1167 = vunpack.c.l.b16 %v395
    %v1168 = vunpack.c.l.b16 %v396
    %v1169 = vunpack.c.l.b16 %v397
    %v1170 = vunpack.c.l.b16 %v398
    %v1171 = vunpack.c.l.b16 %v399
    %v1172 = vunpack.c.l.b16 %v400
    %v1173 = vunpack.c.l.b16 %v401
    %v1174 = vunpack.c.l.b16 %v402
    %v1175 = vunpack.c.l.b16 %v403
    %v1176 = vunpack.c.l.b16 %v404
    %v1177 = vunpack.c.l.b16 %v405
    %v1178 = vunpack.c.l.b16 %v406
    %v1179 = vunpack.c.l.b16 %v407
    %v1180 = vunpack.c.l.b16 %v408
    %v1181 = vunpack.c.l.b16 %v409
    %v1182 = vunpack.c.l.b16 %v410
    %v1183 = vunpack.c.l.b16 %v411
    %v1184 = vunpack.c.l.b16 %v412
    %v1185 = vunpack.c.l.b16 %v413
    %v1186 = vunpack.c.l.b16 %v414
    %v1187 = vunpack.c.l.b16 %v415
    %v1188 = vunpack.c.l.b16 %v416
    %v1189 = vunpack.c.l.b16 %v417
    %v1190 = vunpack.c.l.b16 %v418
    %v1191 = vunpack.c.l.b16 %v419
    %v1192 = vunpack.c.l.b16 %v420
    %v1193 = vunpack.c.l.b16 %v421
    %v1194 = vunpack.c.l.b16 %v422
    %v1195 = vunpack.c.l.b16 %v423
    %v1196 = vunpack.c.l.b16 %v424
    %v1197 = vunpack.c.l.b16 %v425
    %v1198 = vunpack.c.l.b16 %v426
    %v1199 = vunpack.c.l.b16 %v427
    %v1200 = vunpack.c.l.b16 %v428
    %v1201 = vunpack.c.l.b16 %v429
    %v1202 = vunpack.c.l.b16 %v430
    %v1203 = vunpack.c.l.b16 %v431
    %v1204 = vunpack.c.l.b16 %v432
    %v1205 = vunpack.c.l.b16 %v433
    %v1206 = vunpack.c.l.b16 %v434
    %v1207 = vunpack.c.l.b16 %v435
    %v1208 = vunpack.c.l.b16 %v436
    %v1209 = vunpack.c.l.b16 %v437
    %v1210 = vunpack.c.l.b16 %v438
    %v1211 = vunpack.c.l.b16 %v439
    %v1212 = vunpack.c.l.b16 %v440
    %v1213 = vunpack.c.l.b16 %v441
    %v1214 = vunpack.c.l.b16 %v442
    %v1215 = vunpack.c.l.b16 %v443
    %v1216 = vunpack.c.l.b16 %v444
    %v1217 = vunpack.c.l.b16 %v445
    %v1218 = vunpack.c.l.b16 %v446
    %v1219 = vunpack.c.l.b16 %v447
    %v1220 = vunpack.c.l.b16 %v448
    %v1221 = vunpack.c.l.b16 %v449
    %v1222 = vunpack.c.l.b16 %v450
    %v1223 = vunpack.c.l.b16 %v451
    %v1224 = vunpack.c.l.b16 %v452
    %v1225 = vunpack.c.l.b16 %v453
    %v1226 = vunpack.c.l.b16 %v454
    %v1227 = vunpack.c.l.b16 %v455
    %v1228 = vunpack.c.l.b16 %v456
    %v1229 = vunpack.c.l.b16 %v457
    %v1230 = vunpack.c.l.b16 %v458
    %v1231 = vunpack.c.l.b16 %v459
    %v1232 = vunpack.c.l.b16 %v460
    %v1233 = vunpack.c.l.b16 %v461
    %v1234 = vunpack.c.l.b16 %v462
    %v1235 = vunpack.c.l.b16 %v463
    %v1236 = vunpack.c.l.b16 %v464
    %v1237 = vunpack.c.l.b16 %v465
    %v1238 = vunpack.c.l.b16 %v466
    %v1239 = vunpack.c.l.b16 %v467
    %v1240 = vpack.c.b16 %v857, %v856
    %v1241 = vpack.c.b16 %v859, %v858
    %v1242 = vpack.c.b16 %v861, %v860
    %v1243 = vpack.c.b16 %v863, %v862
    %v1244 = vpack.c.b16 %v865, %v864
    %v1245 = vpack.c.b16 %v867, %v866
    %v1246 = vpack.c.b16 %v869, %v868
    %v1247 = vpack.c.b16 %v871, %v870
    %v1248 = vpack.c.b16 %v873, %v872
    %v1249 = vpack.c.b16 %v875, %v874
    %v1250 = vpack.c.b16 %v877, %v876
    %v1251 = vpack.c.b16 %v879, %v878
    %v1252 = vpack.c.b16 %v881, %v880
    %v1253 = vpack.c.b16 %v883, %v882
    %v1254 = vpack.c.b16 %v885, %v884
    %v1255 = vpack.c.b16 %v887, %v886
    %v1256 = vpack.c.b16 %v889, %v888
    %v1257 = vpack.c.b16 %v891, %v890
    %v1258 = vpack.c.b16 %v893, %v892
    %v1259 = vpack.c.b16 %v895, %v894
    %v1260 = vpack.c.b16 %v897, %v896
    %v1261 = vpack.c.b16 %v899, %v898
    %v1262 = vpack.c.b16 %v901, %v900
    %v1263 = vpack.c.b16 %v903, %v902
    %v1264 = vpack.c.b16 %v905, %v904
    %v1265 = vpack.c.b16 %v907, %v906
    %v1266 = vpack.c.b16 %v909, %v908
    %v1267 = vpack.c.b16 %v911, %v910
    %v1268 = vpack.c.b16 %v913, %v912
    %v1269 = vpack.c.b16 %v915, %v914
    %v1270 = vpack.c.b16 %v917, %v916
    %v1271 = vpack.c.b16 %v919, %v918
    %v1272 = vpack.c.b16 %v921, %v920
    %v1273 = vpack.c.b16 %v923, %v922
    %v1274 = vpack.c.b16 %v925, %v924
    %v1275 = vpack.c.b16 %v927, %v926
    %v1276 = vpack.c.b16 %v929, %v928
    %v1277 = vpack.c.b16 %v931, %v930
    %v1278 = vpack.c.b16 %v933, %v932
    %v1279 = vpack.c.b16 %v935, %v934
    %v1280 = vpack.c.b16 %v937, %v936
    %v1281 = vpack.c.b16 %v939, %v938
    %v1282 = vpack.c.b16 %v941, %v940
    %v1283 = vpack.c.b16 %v943, %v942
    %v1284 = vpack.c.b16 %v945, %v944
    %v1285 = vpack.c.b16 %v947, %v946
    %v1286 = vpack.c.b16 %v949, %v948
    %v1287 = vpack.c.b16 %v951, %v950
    %v1288 = vpack.c.b16 %v953, %v952
    %v1289 = vpack.c.b16 %v955, %v954
    %v1290 = vpack.c.b16 %v957, %v956
    %v1291 = vpack.c.b16 %v959, %v958
    %v1292 = vpack.c.b16 %v961, %v960
    %v1293 = vpack.c.b16 %v963, %v962
    %v1294 = vpack.c.b16 %v965, %v964
    %v1295 = vpack.c.b16 %v967, %v966
    %v1296 = vpack.c.b16 %v969, %v968
    %v1297 = vpack.c.b16 %v971, %v970
    %v1298 = vpack.c.b16 %v973, %v972
    %v1299 = vpack.c.b16 %v975, %v974
    %v1300 = vpack.c.b16 %v977, %v976
    %v1301 = vpack.c.b16 %v979, %v978
    %v1302 = vpack.c.b16 %v981, %v980
    %v1303 = vpack.c.b16 %v983, %v982
    %v1304 = vpack.c.b16 %v985, %v984
    %v1305 = vpack.c.b16 %v987, %v986
    %v1306 = vpack.c.b16 %v989, %v988
    %v1307 = vpack.c.b16 %v991, %v990
    %v1308 = vpack.c.b16 %v993, %v992
    %v1309 = vpack.c.b16 %v995, %v994
    %v1310 = vpack.c.b16 %v997, %v996
    %v1311 = vpack.c.b16 %v999, %v998
    %v1312 = vpack.c.b16 %v1001, %v1000
    %v1313 = vpack.c.b16 %v1003, %v1002
    %v1314 = vpack.c.b16 %v1005, %v1004
    %v1315 = vpack.c.b16 %v1007, %v1006
    %v1316 = vpack.c.b16 %v1009, %v1008
    %v1317 = vpack.c.b16 %v1011, %v1010
    %v1318 = vpack.c.b16 %v1013, %v1012
    %v1319 = vpack.c.b16 %v1015, %v1014
    %v1320 = vpack.c.b16 %v1017, %v1016
    %v1321 = vpack.c.b16 %v1019, %v1018
    %v1322 = vpack.c.b16 %v1021, %v1020
    %v1323 = vpack.c.b16 %v1023, %v1022
    %v1324 = vpack.c.b16 %v1025, %v1024
    %v1325 = vpack.c.b16 %v1027, %v1026
    %v1326 = vpack.c.b16 %v1029, %v1028
    %v1327 = vpack.c.b16 %v1031, %v1030
    %v1328 = vpack.c.b16 %v1033, %v1032
    %v1329 = vpack.c.b16 %v1035, %v1034
    %v1330 = vpack.c.b16 %v1037, %v1036
    %v1331 = vpack.c.b16 %v1039, %v1038
    %v1332 = vpack.c.b16 %v1041, %v1040
    %v1333 = vpack.c.b16 %v1043, %v1042
    %v1334 = vpack.c.b16 %v1045, %v1044
    %v1335 = vpack.c.b16 %v1047, %v1046
    %v1336 = vpack.c.b16 %v1049, %v1048
    %v1337 = vpack.c.b16 %v1051, %v1050
    %v1338 = vpack.c.b16 %v1053, %v1052
    %v1339 = vpack.c.b16 %v1055, %v1054
    %v1340 = vpack.c.b16 %v1057, %v1056
    %v1341 = vpack.c.b16 %v1059, %v1058
    %v1342 = vpack.c.b16 %v1061, %v1060
    %v1343 = vpack.c.b16 %v1063, %v1062
    %v1344 = vpack.c.b16 %v1065, %v1064
    %v1345 = vpack.c.b16 %v1067, %v1066
    %v1346 = vpack.c.b16 %v1069, %v1068
    %v1347 = vpack.c.b16 %v1071, %v1070
    %v1348 = vpack.c.b16 %v1073, %v1072
    %v1349 = vpack.c.b16 %v1075, %v1074
    %v1350 = vpack.c.b16 %v1077, %v1076
    %v1351 = vpack.c.b16 %v1079, %v1078
    %v1352 = vpack.c.b16 %v1081, %v1080
    %v1353 = vpack.c.b16 %v1083, %v1082
    %v1354 = vpack.c.b16 %v1085, %v1084
    %v1355 = vpack.c.b16 %v1087, %v1086
    %v1356 = vpack.c.b16 %v1089, %v1088
    %v1357 = vpack.c.b16 %v1091, %v1090
    %v1358 = vpack.c.b16 %v1093, %v1092
    %v1359 = vpack.c.b16 %v1095, %v1094
    %v1360 = vpack.c.b16 %v1097, %v1096
    %v1361 = vpack.c.b16 %v1099, %v1098
    %v1362 = vpack.c.b16 %v1101, %v1100
    %v1363 = vpack.c.b16 %v1103, %v1102
    %v1364 = vpack.c.b16 %v1105, %v1104
    %v1365 = vpack.c.b16 %v1107, %v1106
    %v1366 = vpack.c.b16 %v1109, %v1108
    %v1367 = vpack.c.b16 %v1111, %v1110
    %v1368 = vpack.c.b16 %v1113, %v1112
    %v1369 = vpack.c.b16 %v1115, %v1114
    %v1370 = vpack.c.b16 %v1117, %v1116
    %v1371 = vpack.c.b16 %v1119, %v1118
    %v1372 = vpack.c.b16 %v1121, %v1120
    %v1373 = vpack.c.b16 %v1123, %v1122
    %v1374 = vpack.c.b16 %v1125, %v1124
    %v1375 = vpack.c.b16 %v1127, %v1126
    %v1376 = vpack.c.b16 %v1129, %v1128
    %v1377 = vpack.c.b16 %v1131, %v1130
    %v1378 = vpack.c.b16 %v1133, %v1132
    %v1379 = vpack.c.b16 %v1135, %v1134
    %v1380 = vpack.c.b16 %v1137, %v1136
    %v1381 = vpack.c.b16 %v1139, %v1138
    %v1382 = vpack.c.b16 %v1141, %v1140
    %v1383 = vpack.c.b16 %v1143, %v1142
    %v1384 = vpack.c.b16 %v1145, %v1144
    %v1385 = vpack.c.b16 %v1147, %v1146
    %v1386 = vpack.c.b16 %v1149, %v1148
    %v1387 = vpack.c.b16 %v1151, %v1150
    %v1388 = vpack.c.b16 %v1153, %v1152
    %v1389 = vpack.c.b16 %v1155, %v1154
    %v1390 = vpack.c.b16 %v1157, %v1156
    %v1391 = vpack.c.b16 %v1159, %v1158
    %v1392 = vpack.c.b16 %v1161, %v1160
    %v1393 = vpack.c.b16 %v1163, %v1162
    %v1394 = vpack.c.b16 %v1165, %v1164
    %v1395 = vpack.c.b16 %v1167, %v1166
    %v1396 = vpack.c.b16 %v1169, %v1168
    %v1397 = vpack.c.b16 %v1171, %v1170
    %v1398 = vpack.c.b16 %v1173, %v1172
    %v1399 = vpack.c.b16 %v1175, %v1174
    %v1400 = vpack.c.b16 %v1177, %v1176
    %v1401 = vpack.c.b16 %v1179, %v1178
    %v1402 = vpack.c.b16 %v1181, %v1180
    %v1403 = vpack.c.b16 %v1183, %v1182
    %v1404 = vpack.c.b16 %v1185, %v1184
    %v1405 = vpack.c.b16 %v1187, %v1186
    %v1406 = vpack.c.b16 %v1189, %v1188
    %v1407 = vpack.c.b16 %v1191, %v1190
    %v1408 = vpack.c.b16 %v1193, %v1192
    %v1409 = vpack.c.b16 %v1195, %v1194
    %v1410 = vpack.c.b16 %v1197, %v1196
    %v1411 = vpack.c.b16 %v1199, %v1198
    %v1412 = vpack.c.b16 %v1201, %v1200
    %v1413 = vpack.c.b16 %v1203, %v1202
    %v1414 = vpack.c.b16 %v1205, %v1204
    %v1415 = vpack.c.b16 %v1207, %v1206
    %v1416 = vpack.c.b16 %v1209, %v1208
    %v1417 = vpack.c.b16 %v1211, %v1210
    %v1418 = vpack.c.b16 %v1213, %v1212
    %v1419 = vpack.c.b16 %v1215, %v1214
    %v1420 = vpack.c.b16 %v1217, %v1216
    %v1421 = vpack.c.b16 %v1219, %v1218
    %v1422 = vpack.c.b16 %v1221, %v1220
    %v1423 = vpack.c.b16 %v1223, %v1222
    %v1424 = vpack.c.b16 %v1225, %v1224
    %v1425 = vpack.c.b16 %v1227, %v1226
    %v1426 = vpack.c.b16 %v1229, %v1228
    %v1427 = vpack.c.b16 %v1231, %v1230
    %v1428 = vpack.c.b16 %v1233, %v1232
    %v1429 = vpack.c.b16 %v1235, %v1234
    %v1430 = vpack.c.b16 %v1237, %v1236
    %v1431 = vpack.c.b16 %v1239, %v1238
    %1624 = vmatpush.bf16.msra.mxu0 %v1247
    %1625 = vmatpush.bf16.msra.mxu0 %v1246
    %1626 = vmatpush.bf16.msra.mxu0 %v1245
    %1627 = vmatpush.bf16.msra.mxu0 %v1244
    %1628 = vmatpush.bf16.msra.mxu0 %v1243
    %1629 = vmatpush.bf16.msra.mxu0 %v1242
    %1630 = vmatpush.bf16.msra.mxu0 %v1241
    %1631 = vmatpush.bf16.msra.mxu0 %v1240
    %1632 = vmatmul.bf16.gmra.mxu0 %v60
    %v1633 = vpop.f32.mrf.mxu0
    %v1634 = vadd.f32 %v470, %v1633
    %v1635 = vpop.f32.mrf.mxu0
    %1636 = vdwg.mxu0
    %1637 = vmatpush.bf16.msra.mxu0 %v1255
    %1638 = vmatpush.bf16.msra.mxu0 %v1254
    %1639 = vmatpush.bf16.msra.mxu0 %v1253
    %1640 = vmatpush.bf16.msra.mxu0 %v1252
    %1641 = vmatpush.bf16.msra.mxu0 %v1251
    %1642 = vmatpush.bf16.msra.mxu0 %v1250
    %1643 = vmatpush.bf16.msra.mxu0 %v1249
    %1644 = vmatpush.bf16.msra.mxu0 %v1248
    %1645 = vmatmul.bf16.gmra.mxu0 %v61
    %v1646 = vpop.f32.mrf.mxu0
    %v1647 = vadd.f32 %v1634, %v1646
    %v1648 = vpop.f32.mrf.mxu0
    %1649 = vdwg.mxu0
    %1650 = vmatpush.bf16.msra.mxu0 %v1263
    %1651 = vmatpush.bf16.msra.mxu0 %v1262
    %1652 = vmatpush.bf16.msra.mxu0 %v1261
    %1653 = vmatpush.bf16.msra.mxu0 %v1260
    %1654 = vmatpush.bf16.msra.mxu0 %v1259
    %1655 = vmatpush.bf16.msra.mxu0 %v1258
    %1656 = vmatpush.bf16.msra.mxu0 %v1257
    %1657 = vmatpush.bf16.msra.mxu0 %v1256
    %1658 = vmatmul.bf16.gmra.mxu0 %v62
    %v1659 = vpop.f32.mrf.mxu0
    %v1660 = vadd.f32 %v1647, %v1659
    %v1661 = vpop.f32.mrf.mxu0
    %1662 = vdwg.mxu0
    %1663 = vmatpush.bf16.msra.mxu0 %v1271
    %1664 = vmatpush.bf16.msra.mxu0 %v1270
    %1665 = vmatpush.bf16.msra.mxu0 %v1269
    %1666 = vmatpush.bf16.msra.mxu0 %v1268
    %1667 = vmatpush.bf16.msra.mxu0 %v1267
    %1668 = vmatpush.bf16.msra.mxu0 %v1266
    %1669 = vmatpush.bf16.msra.mxu0 %v1265
    %1670 = vmatpush.bf16.msra.mxu0 %v1264
    %1671 = vmatmul.bf16.gmra.mxu0 %v63
    %v1672 = vpop.f32.mrf.mxu0
    %v1673 = vadd.f32 %v1660, %v1672
    %v1674 = vpop.f32.mrf.mxu0
    %1675 = vdwg.mxu0
    %1676 = vmatpush.bf16.msra.mxu0 %v1279
    %1677 = vmatpush.bf16.msra.mxu0 %v1278
    %1678 = vmatpush.bf16.msra.mxu0 %v1277
    %1679 = vmatpush.bf16.msra.mxu0 %v1276
    %1680 = vmatpush.bf16.msra.mxu0 %v1275
    %1681 = vmatpush.bf16.msra.mxu0 %v1274
    %1682 = vmatpush.bf16.msra.mxu0 %v1273
    %1683 = vmatpush.bf16.msra.mxu0 %v1272
    %1684 = vmatmul.bf16.gmra.mxu0 %v64
    %v1685 = vpop.f32.mrf.mxu0
    %v1686 = vadd.f32 %v1673, %v1685
    %v1687 = vpop.f32.mrf.mxu0
    %1688 = vdwg.mxu0
    %1689 = vmatpush.bf16.msra.mxu0 %v1287
    %1690 = vmatpush.bf16.msra.mxu0 %v1286
    %1691 = vmatpush.bf16.msra.mxu0 %v1285
    %1692 = vmatpush.bf16.msra.mxu0 %v1284
    %1693 = vmatpush.bf16.msra.mxu0 %v1283
    %1694 = vmatpush.bf16.msra.mxu0 %v1282
    %1695 = vmatpush.bf16.msra.mxu0 %v1281
    %1696 = vmatpush.bf16.msra.mxu0 %v1280
    %1697 = vmatmul.bf16.gmra.mxu0 %v65
    %v1698 = vpop.f32.mrf.mxu0
    %v1699 = vadd.f32 %v1686, %v1698
    %v1700 = vpop.f32.mrf.mxu0
    %1701 = vdwg.mxu0
    %1702 = vmatpush.bf16.msra.mxu0 %v1295
    %1703 = vmatpush.bf16.msra.mxu0 %v1294
    %1704 = vmatpush.bf16.msra.mxu0 %v1293
    %1705 = vmatpush.bf16.msra.mxu0 %v1292
    %1706 = vmatpush.bf16.msra.mxu0 %v1291
    %1707 = vmatpush.bf16.msra.mxu0 %v1290
    %1708 = vmatpush.bf16.msra.mxu0 %v1289
    %1709 = vmatpush.bf16.msra.mxu0 %v1288
    %1710 = vmatmul.bf16.gmra.mxu0 %v66
    %v1711 = vpop.f32.mrf.mxu0
    %v1712 = vadd.f32 %v1699, %v1711
    %v1713 = vpop.f32.mrf.mxu0
    %1714 = vdwg.mxu0
    %1715 = vmatpush.bf16.msra.mxu0 %v1303
    %1716 = vmatpush.bf16.msra.mxu0 %v1302
    %1717 = vmatpush.bf16.msra.mxu0 %v1301
    %1718 = vmatpush.bf16.msra.mxu0 %v1300
    %1719 = vmatpush.bf16.msra.mxu0 %v1299
    %1720 = vmatpush.bf16.msra.mxu0 %v1298
    %1721 = vmatpush.bf16.msra.mxu0 %v1297
    %1722 = vmatpush.bf16.msra.mxu0 %v1296
    %1723 = vmatmul.bf16.gmra.mxu0 %v67
    %v1724 = vpop.f32.mrf.mxu0
    %v1725 = vadd.f32 %v1712, %v1724
    %v1726 = vpop.f32.mrf.mxu0
    %1727 = vdwg.mxu0
    %1728 = vmatpush.bf16.msra.mxu0 %v1311
    %1729 = vmatpush.bf16.msra.mxu0 %v1310
    %1730 = vmatpush.bf16.msra.mxu0 %v1309
    %1731 = vmatpush.bf16.msra.mxu0 %v1308
    %1732 = vmatpush.bf16.msra.mxu0 %v1307
    %1733 = vmatpush.bf16.msra.mxu0 %v1306
    %1734 = vmatpush.bf16.msra.mxu0 %v1305
    %1735 = vmatpush.bf16.msra.mxu0 %v1304
    %1736 = vmatmul.bf16.gmra.mxu0 %v68
    %v1737 = vpop.f32.mrf.mxu0
    %v1738 = vadd.f32 %v1725, %v1737
    %v1739 = vpop.f32.mrf.mxu0
    %1740 = vdwg.mxu0
    %1741 = vmatpush.bf16.msra.mxu0 %v1319
    %1742 = vmatpush.bf16.msra.mxu0 %v1318
    %1743 = vmatpush.bf16.msra.mxu0 %v1317
    %1744 = vmatpush.bf16.msra.mxu0 %v1316
    %1745 = vmatpush.bf16.msra.mxu0 %v1315
    %1746 = vmatpush.bf16.msra.mxu0 %v1314
    %1747 = vmatpush.bf16.msra.mxu0 %v1313
    %1748 = vmatpush.bf16.msra.mxu0 %v1312
    %1749 = vmatmul.bf16.gmra.mxu0 %v69
    %v1750 = vpop.f32.mrf.mxu0
    %v1751 = vadd.f32 %v1738, %v1750
    %v1752 = vpop.f32.mrf.mxu0
    %1753 = vdwg.mxu0
    %1754 = vmatpush.bf16.msra.mxu0 %v1327
    %1755 = vmatpush.bf16.msra.mxu0 %v1326
    %1756 = vmatpush.bf16.msra.mxu0 %v1325
    %1757 = vmatpush.bf16.msra.mxu0 %v1324
    %1758 = vmatpush.bf16.msra.mxu0 %v1323
    %1759 = vmatpush.bf16.msra.mxu0 %v1322
    %1760 = vmatpush.bf16.msra.mxu0 %v1321
    %1761 = vmatpush.bf16.msra.mxu0 %v1320
    %1762 = vmatmul.bf16.gmra.mxu0 %v70
    %v1763 = vpop.f32.mrf.mxu0
    %v1764 = vadd.f32 %v1751, %v1763
    %v1765 = vpop.f32.mrf.mxu0
    %1766 = vdwg.mxu0
    %1767 = vmatpush.bf16.msra.mxu0 %v1335
    %1768 = vmatpush.bf16.msra.mxu0 %v1334
    %1769 = vmatpush.bf16.msra.mxu0 %v1333
    %1770 = vmatpush.bf16.msra.mxu0 %v1332
    %1771 = vmatpush.bf16.msra.mxu0 %v1331
    %1772 = vmatpush.bf16.msra.mxu0 %v1330
    %1773 = vmatpush.bf16.msra.mxu0 %v1329
    %1774 = vmatpush.bf16.msra.mxu0 %v1328
    %1775 = vmatmul.bf16.gmra.mxu0 %v71
    %v1776 = vpop.f32.mrf.mxu0
    %v1777 = vadd.f32 %v1764, %v1776
    %v1778 = vpop.f32.mrf.mxu0
    %1779 = vdwg.mxu0
    %1780 = vmatpush.bf16.msra.mxu0 %v1343
    %1781 = vmatpush.bf16.msra.mxu0 %v1342
    %1782 = vmatpush.bf16.msra.mxu0 %v1341
    %1783 = vmatpush.bf16.msra.mxu0 %v1340
    %1784 = vmatpush.bf16.msra.mxu0 %v1339
    %1785 = vmatpush.bf16.msra.mxu0 %v1338
    %1786 = vmatpush.bf16.msra.mxu0 %v1337
    %1787 = vmatpush.bf16.msra.mxu0 %v1336
    %1788 = vmatmul.bf16.gmra.mxu0 %v72
    %v1789 = vpop.f32.mrf.mxu0
    %v1790 = vadd.f32 %v1777, %v1789
    %v1791 = vpop.f32.mrf.mxu0
    %1792 = vdwg.mxu0
    %1793 = vmatpush.bf16.msra.mxu0 %v1351
    %1794 = vmatpush.bf16.msra.mxu0 %v1350
    %1795 = vmatpush.bf16.msra.mxu0 %v1349
    %1796 = vmatpush.bf16.msra.mxu0 %v1348
    %1797 = vmatpush.bf16.msra.mxu0 %v1347
    %1798 = vmatpush.bf16.msra.mxu0 %v1346
    %1799 = vmatpush.bf16.msra.mxu0 %v1345
    %1800 = vmatpush.bf16.msra.mxu0 %v1344
    %1801 = vmatmul.bf16.gmra.mxu0 %v73
    %v1802 = vpop.f32.mrf.mxu0
    %v1803 = vadd.f32 %v1790, %v1802
    %v1804 = vpop.f32.mrf.mxu0
    %1805 = vdwg.mxu0
    %1806 = vmatpush.bf16.msra.mxu0 %v1359
    %1807 = vmatpush.bf16.msra.mxu0 %v1358
    %1808 = vmatpush.bf16.msra.mxu0 %v1357
    %1809 = vmatpush.bf16.msra.mxu0 %v1356
    %1810 = vmatpush.bf16.msra.mxu0 %v1355
    %1811 = vmatpush.bf16.msra.mxu0 %v1354
    %1812 = vmatpush.bf16.msra.mxu0 %v1353
    %1813 = vmatpush.bf16.msra.mxu0 %v1352
    %1814 = vmatmul.bf16.gmra.mxu0 %v74
    %v1815 = vpop.f32.mrf.mxu0
    %v1816 = vadd.f32 %v1803, %v1815
    %v1817 = vpop.f32.mrf.mxu0
    %1818 = vdwg.mxu0
    %1819 = vmatpush.bf16.msra.mxu0 %v1367
    %1820 = vmatpush.bf16.msra.mxu0 %v1366
    %1821 = vmatpush.bf16.msra.mxu0 %v1365
    %1822 = vmatpush.bf16.msra.mxu0 %v1364
    %1823 = vmatpush.bf16.msra.mxu0 %v1363
    %1824 = vmatpush.bf16.msra.mxu0 %v1362
    %1825 = vmatpush.bf16.msra.mxu0 %v1361
    %1826 = vmatpush.bf16.msra.mxu0 %v1360
    %1827 = vmatmul.bf16.gmra.mxu0 %v75
    %v1828 = vpop.f32.mrf.mxu0
    %v1829 = vadd.f32 %v1816, %v1828
    %v1830 = vpop.f32.mrf.mxu0
    %1831 = vdwg.mxu0
    %1832 = vmatpush.bf16.msra.mxu0 %v1375
    %1833 = vmatpush.bf16.msra.mxu0 %v1374
    %1834 = vmatpush.bf16.msra.mxu0 %v1373
    %1835 = vmatpush.bf16.msra.mxu0 %v1372
    %1836 = vmatpush.bf16.msra.mxu0 %v1371
    %1837 = vmatpush.bf16.msra.mxu0 %v1370
    %1838 = vmatpush.bf16.msra.mxu0 %v1369
    %1839 = vmatpush.bf16.msra.mxu0 %v1368
    %1840 = vmatmul.bf16.gmra.mxu0 %v76
    %v1841 = vpop.f32.mrf.mxu0
    %v1842 = vadd.f32 %v1829, %v1841
    %v1843 = vpop.f32.mrf.mxu0
    %1844 = vdwg.mxu0
    %1845 = vmatpush.bf16.msra.mxu0 %v1383
    %1846 = vmatpush.bf16.msra.mxu0 %v1382
    %1847 = vmatpush.bf16.msra.mxu0 %v1381
    %1848 = vmatpush.bf16.msra.mxu0 %v1380
    %1849 = vmatpush.bf16.msra.mxu0 %v1379
    %1850 = vmatpush.bf16.msra.mxu0 %v1378
    %1851 = vmatpush.bf16.msra.mxu0 %v1377
    %1852 = vmatpush.bf16.msra.mxu0 %v1376
    %1853 = vmatmul.bf16.gmra.mxu0 %v77
    %v1854 = vpop.f32.mrf.mxu0
    %v1855 = vadd.f32 %v1842, %v1854
    %v1856 = vpop.f32.mrf.mxu0
    %1857 = vdwg.mxu0
    %1858 = vmatpush.bf16.msra.mxu0 %v1391
    %1859 = vmatpush.bf16.msra.mxu0 %v1390
    %1860 = vmatpush.bf16.msra.mxu0 %v1389
    %1861 = vmatpush.bf16.msra.mxu0 %v1388
    %1862 = vmatpush.bf16.msra.mxu0 %v1387
    %1863 = vmatpush.bf16.msra.mxu0 %v1386
    %1864 = vmatpush.bf16.msra.mxu0 %v1385
    %1865 = vmatpush.bf16.msra.mxu0 %v1384
    %1866 = vmatmul.bf16.gmra.mxu0 %v78
    %v1867 = vpop.f32.mrf.mxu0
    %v1868 = vadd.f32 %v1855, %v1867
    %v1869 = vpop.f32.mrf.mxu0
    %1870 = vdwg.mxu0
    %1871 = vmatpush.bf16.msra.mxu0 %v1399
    %1872 = vmatpush.bf16.msra.mxu0 %v1398
    %1873 = vmatpush.bf16.msra.mxu0 %v1397
    %1874 = vmatpush.bf16.msra.mxu0 %v1396
    %1875 = vmatpush.bf16.msra.mxu0 %v1395
    %1876 = vmatpush.bf16.msra.mxu0 %v1394
    %1877 = vmatpush.bf16.msra.mxu0 %v1393
    %1878 = vmatpush.bf16.msra.mxu0 %v1392
    %1879 = vmatmul.bf16.gmra.mxu0 %v79
    %v1880 = vpop.f32.mrf.mxu0
    %v1881 = vadd.f32 %v1868, %v1880
    %v1882 = vpop.f32.mrf.mxu0
    %1883 = vdwg.mxu0
    %1884 = vmatpush.bf16.msra.mxu0 %v1407
    %1885 = vmatpush.bf16.msra.mxu0 %v1406
    %1886 = vmatpush.bf16.msra.mxu0 %v1405
    %1887 = vmatpush.bf16.msra.mxu0 %v1404
    %1888 = vmatpush.bf16.msra.mxu0 %v1403
    %1889 = vmatpush.bf16.msra.mxu0 %v1402
    %1890 = vmatpush.bf16.msra.mxu0 %v1401
    %1891 = vmatpush.bf16.msra.mxu0 %v1400
    %1892 = vmatmul.bf16.gmra.mxu0 %v80
    %v1893 = vpop.f32.mrf.mxu0
    %v1894 = vadd.f32 %v1881, %v1893
    %v1895 = vpop.f32.mrf.mxu0
    %1896 = vdwg.mxu0
    %1897 = vmatpush.bf16.msra.mxu0 %v1415
    %1898 = vmatpush.bf16.msra.mxu0 %v1414
    %1899 = vmatpush.bf16.msra.mxu0 %v1413
    %1900 = vmatpush.bf16.msra.mxu0 %v1412
    %1901 = vmatpush.bf16.msra.mxu0 %v1411
    %1902 = vmatpush.bf16.msra.mxu0 %v1410
    %1903 = vmatpush.bf16.msra.mxu0 %v1409
    %1904 = vmatpush.bf16.msra.mxu0 %v1408
    %1905 = vmatmul.bf16.gmra.mxu0 %v81
    %v1906 = vpop.f32.mrf.mxu0
    %v1907 = vadd.f32 %v1894, %v1906
    %v1908 = vpop.f32.mrf.mxu0
    %1909 = vdwg.mxu0
    %1910 = vmatpush.bf16.msra.mxu0 %v1423
    %1911 = vmatpush.bf16.msra.mxu0 %v1422
    %1912 = vmatpush.bf16.msra.mxu0 %v1421
    %1913 = vmatpush.bf16.msra.mxu0 %v1420
    %1914 = vmatpush.bf16.msra.mxu0 %v1419
    %1915 = vmatpush.bf16.msra.mxu0 %v1418
    %1916 = vmatpush.bf16.msra.mxu0 %v1417
    %1917 = vmatpush.bf16.msra.mxu0 %v1416
    %1918 = vmatmul.bf16.gmra.mxu0 %v82
    %v1919 = vpop.f32.mrf.mxu0
    %v1920 = vadd.f32 %v1907, %v1919
    %v1921 = vpop.f32.mrf.mxu0
    %1922 = vdwg.mxu0
    %1923 = vmatpush.bf16.msra.mxu0 %v1431
    %1924 = vmatpush.bf16.msra.mxu0 %v1430
    %1925 = vmatpush.bf16.msra.mxu0 %v1429
    %1926 = vmatpush.bf16.msra.mxu0 %v1428
    %1927 = vmatpush.bf16.msra.mxu0 %v1427
    %1928 = vmatpush.bf16.msra.mxu0 %v1426
    %1929 = vmatpush.bf16.msra.mxu0 %v1425
    %1930 = vmatpush.bf16.msra.mxu0 %v1424
    %1931 = vmatmul.bf16.gmra.mxu0 %v83
    %v1932 = vpop.f32.mrf.mxu0
    %v1933 = vadd.f32 %v1920, %v1932
    %v1934 = vpop.f32.mrf.mxu0
    %1935 = vdwg.mxu0
    %v1936 = vxor.u32 %v1933, 2147483648
    %v1937 = vmul.f32 %v1936, 1.442695
    %v1938 = vpow.pop %v1937
    %v1939 = vadd.f32 %v1938, 1.0
    %v1940 = vrcp.pop %v1939
    %v1941 = vmul.f32 %v1939, %v1940
    %v1942 = vsub.f32 1.0, %v1941
    %v1943 = vmul.f32 %v1940, %v1942
    %v1944 = vadd.f32 %v1940, %v1943
    %vm1945 = vweird.f32 %v1939
    %vm1946 = vweird.f32 %v1940
    %vm1947 = vmor %vm1945, %vm1946
    %v1948 = vsel %vm1947, %v1940, %v1944
    %v1949 = vand.u32 2147483647, %v1939
    %vm1950 = vcmp.eq.f32.partialorder %v1949, 8.507059e+37
    %v1951 = vand.u32 %v1939, 2147483648
    %v1952 = vor.u32 1.1754944e-38, %v1951
    %v1953 = vsel %vm1950, %v1952, %v1948
    %v1954 = vmul.f32 1.0, %v1953
    %v1955 = vpack.c.bf16 %v1954, %v1954
    %v1956 = vld [vmem:[%s3] sm:$0xf]
    %v1957 = vld [vmem:[%s3 + $0x4] sm:$0xf]
    %v1958 = vld [vmem:[%s3 + $0x8] sm:$0xf]
    %v1959 = vld [vmem:[%s3 + $0xc] sm:$0xf]
    %v1960 = vld [vmem:[%s3 + $0x10] sm:$0xf]
    %v1961 = vld [vmem:[%s3 + $0x14] sm:$0xf]
    %v1962 = vld [vmem:[%s3 + $0x18] sm:$0xf]
    %v1963 = vld [vmem:[%s3 + $0x1c] sm:$0xf]
    %v1964 = vld [vmem:[%s3 + $0x20] sm:$0xf]
    %v1965 = vld [vmem:[%s3 + $0x24] sm:$0xf]
    %v1966 = vld [vmem:[%s3 + $0x28] sm:$0xf]
    %v1967 = vld [vmem:[%s3 + $0x2c] sm:$0xf]
    %v1968 = vld [vmem:[%s3 + $0x30] sm:$0xf]
    %v1969 = vld [vmem:[%s3 + $0x34] sm:$0xf]
    %v1970 = vld [vmem:[%s3 + $0x38] sm:$0xf]
    %v1971 = vld [vmem:[%s3 + $0x3c] sm:$0xf]
    %v1972 = vld [vmem:[%s4] sm:$0x1]
    %v1974 = vperm.slane %v1972, 0
    %v1992 = vunpack.c.l.b16 %v1956
    %v1993 = vunpack.c.l.b16 %v1957
    %v1994 = vunpack.c.l.b16 %v1958
    %v1995 = vunpack.c.l.b16 %v1959
    %v1996 = vunpack.c.l.b16 %v1960
    %v1997 = vunpack.c.l.b16 %v1961
    %v1998 = vunpack.c.l.b16 %v1962
    %v1999 = vunpack.c.l.b16 %v1963
    %v2000 = vunpack.c.l.b16 %v1964
    %v2001 = vunpack.c.l.b16 %v1965
    %v2002 = vunpack.c.l.b16 %v1966
    %v2003 = vunpack.c.l.b16 %v1967
    %v2004 = vunpack.c.l.b16 %v1968
    %v2005 = vunpack.c.l.b16 %v1969
    %v2006 = vunpack.c.l.b16 %v1970
    %v2007 = vunpack.c.l.b16 %v1971
    %v2008 = vpack.c.b16 %v1993, %v1992
    %v2009 = vpack.c.b16 %v1995, %v1994
    %v2010 = vpack.c.b16 %v1997, %v1996
    %v2011 = vpack.c.b16 %v1999, %v1998
    %v2012 = vpack.c.b16 %v2001, %v2000
    %v2013 = vpack.c.b16 %v2003, %v2002
    %v2014 = vpack.c.b16 %v2005, %v2004
    %v2015 = vpack.c.b16 %v2007, %v2006
    %2024 = vmatpush.bf16.msra.mxu0 %v2015
    %2025 = vmatpush.bf16.msra.mxu0 %v2014
    %2026 = vmatpush.bf16.msra.mxu0 %v2013
    %2027 = vmatpush.bf16.msra.mxu0 %v2012
    %2028 = vmatpush.bf16.msra.mxu0 %v2011
    %2029 = vmatpush.bf16.msra.mxu0 %v2010
    %2030 = vmatpush.bf16.msra.mxu0 %v2009
    %2031 = vmatpush.bf16.msra.mxu0 %v2008
    %2032 = vmatmul.bf16.gmra.mxu0 %v1955
    %v2033 = vpop.f32.mrf.mxu0
    %v2034 = vadd.f32 %v1974, %v2033
    %v2035 = vpop.f32.mrf.mxu0
    %2036 = vdwg.mxu0
    %v2037 = vxor.u32 %v2034, 2147483648
    %v2038 = vmul.f32 %v2037, 1.442695
    %v2039 = vpow.pop %v2038
    %v2040 = vadd.f32 %v2039, 1.0
    %v2041 = vrcp.pop %v2040
    %v2042 = vmul.f32 %v2040, %v2041
    %v2043 = vsub.f32 1.0, %v2042
    %v2044 = vmul.f32 %v2041, %v2043
    %v2045 = vadd.f32 %v2041, %v2044
    %vm2046 = vweird.f32 %v2040
    %vm2047 = vweird.f32 %v2041
    %vm2048 = vmor %vm2046, %vm2047
    %v2049 = vsel %vm2048, %v2041, %v2045
    %v2050 = vand.u32 2147483647, %v2040
    %vm2051 = vcmp.eq.f32.partialorder %v2050, 8.507059e+37
    %v2052 = vand.u32 %v2040, 2147483648
    %v2053 = vor.u32 1.1754944e-38, %v2052
    %v2054 = vsel %vm2051, %v2053, %v2049
    %v2055 = vmul.f32 1.0, %v2054
    %v2056 = vpack.c.bf16 %v2055, %v2055
    %2057 = vst [vmem:[%s5] sm:$0xf] %v2056
    // Predicated region
    $region26: #{_lambda_.1} parent=1 // pred_check
      _
    $region27: #{_lambda_.1} parent=1 // pred_check_branch
      %2059 = sbr.rel (0) target = $region29
    $region28: #{_lambda_.1} parent=1 // pred_region
      _
    $region29: #{_lambda_.1} parent=1 // pred_fallthru
      _
    // Predicated region
    $region30: #{_lambda_.1} parent=1 // pred_check
      _
    $region31: #{_lambda_.1} parent=1 // pred_check_branch
      %2061 = sbr.rel (0) target = $region33
    $region32: #{_lambda_.1} parent=1 // pred_region
      _
    $region33: #{_lambda_.1} parent=1 // pred_fallthru
      _
    %2062 = vsyncpa [#allocation3], 1

</llo_original>
